<compile_context>
chip_gen: v6e
topology: v6e:2x2x1
jax: 0.10.0
libtpu: 0.0.40
codegen_flags: <defaults>
</compile_context>

<pallas_src>
import functools
import math

import jax
import jax.numpy as jnp
from jax.experimental import pallas as pl
from jax.experimental.pallas import tpu as pltpu


def _add_attn_kernel(xq_ref, xv_ref, m_ref, mask_ref, w1_ref, w2_ref, o_ref, *,
                     score_dtype):
    # Per grid step (query chunk q):
    #   xq   (Tq, B, Di)      query rows of `input` for this chunk
    #   xv   (T,  B, Di)      full `input` (context values; resident, constant index map)
    #   m    (T,  B, Dm)      full `memory` (keys; resident, constant index map)
    #   mask (B,  T)          memory mask
    #   w1   (Di+Dm, A), w2 (1, A)
    #   o    (1, Tq, B*2*Di)  fused [context, input] rows, lane-dense
    Tq, B, Di = xq_ref.shape
    T = m_ref.shape[0]
    Dm = m_ref.shape[2]
    A = w1_ref.shape[1]

    w1 = w1_ref[...]
    w2 = w2_ref[...][0]                      # (A,)
    xq = xq_ref[...]
    xv = xv_ref[...]
    mm = m_ref[...]
    mask = mask_ref[...]

    # Per-position projections as tall flattened matmuls.  Splitting W1 by column
    # halves is identical to Linear(cat([input, memory], -1)).  Recomputing the
    # memory projection per chunk rides on MXU slack (the kernel is vector-bound).
    u = jnp.dot(xq.reshape(Tq * B, Di), w1[:Di, :],
                preferred_element_type=jnp.float32).reshape(Tq, B, A)
    v = jnp.dot(mm.reshape(T * B, Dm), w1[Di:, :],
                preferred_element_type=jnp.float32).reshape(T, B, A)

    w2_b = w2.astype(score_dtype).reshape(1, A, 1)   # hoisted out of the batch loop
    neg_big = jnp.float32(-1e30)

    out_parts = []
    # Static unroll over the (compile-time) batch; each iteration touches only a
    # bounded, lane-dense (Tq, A, T) block with the memory axis on lanes.
    for b in range(B):
        u_b = u[:, b, :]                              # (Tq, A)
        v_bt = jnp.transpose(v[:, b, :])              # (A, T): memory axis -> lanes (XLU)
        t = jnp.tanh((u_b[:, :, None] + v_bt[None, :, :]).astype(score_dtype))
        # logits[i, j] = sum_a tanh(u[i, a] + v[j, a]) * w2[a]  -- sublane reduce over A
        logits = jnp.sum((t * w2_b).astype(jnp.float32), axis=1)          # (Tq, T)

        # softmax_mask over the memory axis (lane-dense last dim).
        masked = jnp.where(mask[b][None, :] > 0.0, logits, neg_big)
        mx = jnp.max(masked, axis=-1, keepdims=True)
        e = jnp.exp(masked - mx)
        denom = jnp.sum(e, axis=-1, keepdims=True)
        score = e * (1.0 / denom)                     # exact normalization (tiny divide)

        # Context over the *input* values (as the module does).  Contraction dim is
        # T (>= 128 at production sizes); the MXU has slack either way.
        ctx = jnp.dot(score.astype(xv.dtype), xv[:, b, :],
                      preferred_element_type=jnp.float32)                  # (Tq, Di)
        out_parts.append(ctx.astype(o_ref.dtype))
        out_parts.append(xq[:, b, :].astype(o_ref.dtype))  # fused cat([context, input])

    # Single lane-dense store per grid step: (Tq, B*2*Di).
    o_ref[0] = jnp.concatenate(out_parts, axis=-1)


def _pick_query_chunk(T, A, Tm, interm_budget_bytes=2 << 20):
    """Largest divisor Tq of T such that the grid keeps >= 4 steps when T allows
    (>= 2 per v7x TensorCore) and the live (Tq, A, Tm) f32 score block stays within
    a small VMEM/vreg budget."""
    divisors = [d for d in range(1, T + 1) if T % d == 0]
    cands = [d for d in divisors if T // d >= 4] or divisors[:1]
    fits = [d for d in cands if 3 * d * A * Tm * 4 <= interm_budget_bytes]
    return max(fits) if fits else cands[0]


def _vmem_limit_bytes(T, B, Di, Dm, A, tq):
    """Explicit VMEM budget: double-buffered pipeline blocks + resident operands +
    live score intermediates, capped safely below v7x's 64 MiB physical VMEM."""
    f32 = 4
    blocks = 2 * f32 * (
        tq * B * Di            # query block (pipelined)
        + tq * B * 2 * Di      # fused output block (pipelined)
        + T * B * Di           # input values (constant index map, resident)
        + T * B * Dm           # memory keys (constant index map, resident)
        + B * T                # mask
        + (Di + Dm) * A + A)   # weights
    interm = 4 * f32 * tq * A * T      # live copies of the per-example score block
    est = blocks + interm + (2 << 20)  # + Mosaic internal scratch slack
    return int(min(max(est, 16 << 20), 44 << 20))


def static_add_attention(inp, mem, mask, w1, w2, *, query_chunk=None,
                         score_dtype=jnp.float32):
    """Mirrors StaticAddAttention.forward (inference, time-major).

    inp: (T, B, Di), mem: (T, B, Dm), mask: (T, B) float{0,1} -> (T, B, 2*Di).
    W1 is stored transposed from PyTorch: (Di+Dm, A); w2 is (A,).
    """
    T, B, Di = inp.shape
    Tm, Bm, Dm = mem.shape
    assert Tm == T and Bm == B, "StaticAddAttention requires len(memory) == len(input)"
    assert w1.shape[0] == Di + Dm
    A = w1.shape[1]

    if query_chunk is None:
        query_chunk = _pick_query_chunk(T, A, T)
    assert T % query_chunk == 0  # TODO(synk): ragged T would need a masked tail block
    nq = T // query_chunk

    # Only the tiny 2-D mask changes layout; inp/mem/output stay time-major, so there
    # are no big wrapper-level HBM transposes around the kernel.
    mask_bt = jnp.asarray(mask, jnp.float32).T          # (B, T)
    w2_2d = jnp.asarray(w2, jnp.float32).reshape(1, A)

    kernel = functools.partial(_add_attn_kernel, score_dtype=score_dtype)

    out_flat = pl.pallas_call(
        kernel,
        out_shape=jax.ShapeDtypeStruct((nq, query_chunk, B * 2 * Di), inp.dtype),
        grid_spec=pltpu.PrefetchScalarGridSpec(
            num_scalar_prefetch=0,
            grid=(nq,),
            in_specs=[
                pl.BlockSpec((query_chunk, B, Di), lambda q: (q, 0, 0)),  # query rows
                # Constant index maps below: fetched once, stay resident across the
                # grid.  (pipeline_mode=pl.Buffered(1) would free one buffer each if
                # VMEM gets tight at production sizes.)
                pl.BlockSpec((T, B, Di), lambda q: (0, 0, 0)),            # context values
                pl.BlockSpec((T, B, Dm), lambda q: (0, 0, 0)),            # memory keys
                pl.BlockSpec((B, T), lambda q: (0, 0)),                   # memory mask
                pl.BlockSpec((Di + Dm, A), lambda q: (0, 0)),             # W1 (shared)
                pl.BlockSpec((1, A), lambda q: (0, 0)),                   # w2 (shared)
            ],
            out_specs=pl.BlockSpec((1, query_chunk, B * 2 * Di),
                                   lambda q: (q, 0, 0)),
        ),
        compiler_params=pltpu.CompilerParams(
            dimension_semantics=("parallel",),
            vmem_limit_bytes=_vmem_limit_bytes(T, B, Di, Dm, A, query_chunk),
        ),
    )(inp, inp, mem, mask_bt, w1, w2_2d)

    # Free reshape: (nq, Tq, B*2*Di) is laid out exactly like (T, B, 2*Di).
    return out_flat.reshape(T, B, 2 * Di)


def _reference(inp, mem, mask, w1, w2):
    """Plain-JAX mirror of the module forward (time-major) for sanity checking."""
    T = inp.shape[0]
    mem_key = jnp.broadcast_to(mem[None], (T,) + mem.shape)               # (T, T, B, Dm)
    inp_key = jnp.broadcast_to(inp[:, None], (T, T) + inp.shape[1:])      # (T, T, B, Di)
    feats = jnp.concatenate([inp_key, mem_key], axis=-1)                  # (T, T, B, Di+Dm)
    h = jnp.tanh(feats @ w1)                                              # (T, T, B, A)
    logits = h @ w2                                                       # (T, T, B)
    masked = jnp.where(mask[None] > 0, logits, -1e30)
    score = jax.nn.softmax(masked, axis=1)
    context = jnp.sum(score[..., None] * inp[None], axis=1)               # (T, B, Di)
    return jnp.concatenate([context, inp], axis=-1)


if __name__ == "__main__":
    input_size = 32      # Di
    memory_size = 48     # Dm (can differ from Di)
    attention_size = 32  # A
    T, B = 16, 4         # module requires len(memory) == len(input) == T

    key = jax.random.PRNGKey(0)
    k1, k2, k3, k4, k5 = jax.random.split(key, 5)

    # Time-major tensors, as the module expects.
    inp = jax.random.normal(k1, (T, B, input_size), dtype=jnp.float32)
    mem = jax.random.normal(k2, (T, B, memory_size), dtype=jnp.float32)
    mask = (jax.random.uniform(k3, (T, B)) > 0.3).astype(jnp.float32)
    mask = mask.at[0, :].set(1.0)  # at least one valid memory position per example

    # PyTorch stores Linear weights as (out, in); we keep the JAX-friendly transposes.
    b1 = 1.0 / math.sqrt(input_size + memory_size)
    w1 = jax.random.uniform(k4, (input_size + memory_size, attention_size),
                            minval=-b1, maxval=b1, dtype=jnp.float32)
    b2 = 1.0 / math.sqrt(attention_size)
    w2 = jax.random.uniform(k5, (attention_size,),
                            minval=-b2, maxval=b2, dtype=jnp.float32)

    out = static_add_attention(inp, mem, mask, w1, w2)
    out = jax.block_until_ready(out)

    ref = _reference(inp, mem, mask, w1, w2)
    assert out.shape == (T, B, 2 * input_size), out.shape
    err = float(jnp.max(jnp.abs(out - ref)))
    # exact softmax normalization in-kernel -> tight tolerance
    assert jnp.allclose(out, ref, atol=1e-3, rtol=1e-3), err

    print("KERNEL_OK")
</pallas_src>

<mosaic_0001>
module attributes {stable_mosaic.version = 11 : i64} {
  func.func @_add_attn_kernel(%arg0: i32, %arg1: memref<4x4x32xf32, #tpu.memory_space<vmem>>, %arg2: memref<16x4x32xf32, #tpu.memory_space<vmem>>, %arg3: memref<16x4x48xf32, #tpu.memory_space<vmem>>, %arg4: memref<4x16xf32, #tpu.memory_space<vmem>>, %arg5: memref<80x32xf32, #tpu.memory_space<vmem>>, %arg6: memref<1x32xf32, #tpu.memory_space<vmem>>, %arg7: memref<1x4x256xf32, #tpu.memory_space<vmem>>) attributes {dimension_semantics = [#tpu.dimension_semantics<parallel>], iteration_bounds = array<i64: 4>, scalar_prefetch = 0 : i64, scratch_operands = 0 : i64, tpu.core_type = #tpu.core_type<tc>, window_params = [{transform_indices = @transform_0, window_bounds = array<i64: 4, 4, 32>}, {pipeline_mode = #tpu.pipeline_mode<synchronous>, transform_indices = @transform_1, window_bounds = array<i64: 16, 4, 32>}, {pipeline_mode = #tpu.pipeline_mode<synchronous>, transform_indices = @transform_2, window_bounds = array<i64: 16, 4, 48>}, {pipeline_mode = #tpu.pipeline_mode<synchronous>, transform_indices = @transform_3, window_bounds = array<i64: 4, 16>}, {pipeline_mode = #tpu.pipeline_mode<synchronous>, transform_indices = @transform_4, window_bounds = array<i64: 80, 32>}, {pipeline_mode = #tpu.pipeline_mode<synchronous>, transform_indices = @transform_5, window_bounds = array<i64: 1, 32>}, {transform_indices = @transform_6, window_bounds = array<i64: 1, 4, 256>}]} {
    %c0 = arith.constant 0 : index
    %c0_0 = arith.constant 0 : index
    %0 = vector.load %arg5[%c0, %c0_0] : memref<80x32xf32, #tpu.memory_space<vmem>>, vector<80x32xf32>
    %c0_1 = arith.constant 0 : index
    %c0_2 = arith.constant 0 : index
    %1 = vector.load %arg6[%c0_1, %c0_2] : memref<1x32xf32, #tpu.memory_space<vmem>>, vector<1x32xf32>
    %2 = vector.shape_cast %1 : vector<1x32xf32> to vector<32xf32>
    %c0_3 = arith.constant 0 : index
    %c0_4 = arith.constant 0 : index
    %c0_5 = arith.constant 0 : index
    %3 = vector.load %arg1[%c0_3, %c0_4, %c0_5] : memref<4x4x32xf32, #tpu.memory_space<vmem>>, vector<4x4x32xf32>
    %c0_6 = arith.constant 0 : index
    %c0_7 = arith.constant 0 : index
    %c0_8 = arith.constant 0 : index
    %4 = vector.load %arg2[%c0_6, %c0_7, %c0_8] : memref<16x4x32xf32, #tpu.memory_space<vmem>>, vector<16x4x32xf32>
    %c0_9 = arith.constant 0 : index
    %c0_10 = arith.constant 0 : index
    %c0_11 = arith.constant 0 : index
    %5 = vector.load %arg3[%c0_9, %c0_10, %c0_11] : memref<16x4x48xf32, #tpu.memory_space<vmem>>, vector<16x4x48xf32>
    %c0_12 = arith.constant 0 : index
    %c0_13 = arith.constant 0 : index
    %6 = vector.load %arg4[%c0_12, %c0_13] : memref<4x16xf32, #tpu.memory_space<vmem>>, vector<4x16xf32>
    %7 = vector.shape_cast %3 : vector<4x4x32xf32> to vector<16x32xf32>
    %8 = vector.extract_strided_slice %0 {offsets = [0, 0], sizes = [32, 32], strides = [1, 1]} : vector<80x32xf32> to vector<32x32xf32>
    %cst = arith.constant dense<0.000000e+00> : vector<16x32xf32>
    %9 = tpu.matmul %7, %8, %cst {dimension_numbers = #tpu.dot_dimension_numbers<[1], [0], [0], [1], [0, 0, 1, 1], [], []>} : vector<16x32xf32>, vector<32x32xf32>, vector<16x32xf32> -> vector<16x32xf32>
    %10 = vector.shape_cast %9 : vector<16x32xf32> to vector<4x4x32xf32>
    %11 = vector.shape_cast %5 : vector<16x4x48xf32> to vector<64x48xf32>
    %12 = vector.extract_strided_slice %0 {offsets = [32, 0], sizes = [48, 32], strides = [1, 1]} : vector<80x32xf32> to vector<48x32xf32>
    %cst_14 = arith.constant dense<0.000000e+00> : vector<64x32xf32>
    %13 = tpu.matmul %11, %12, %cst_14 {dimension_numbers = #tpu.dot_dimension_numbers<[1], [0], [0], [1], [0, 0, 1, 1], [], []>} : vector<64x48xf32>, vector<48x32xf32>, vector<64x32xf32> -> vector<64x32xf32>
    %14 = vector.shape_cast %13 : vector<64x32xf32> to vector<16x4x32xf32>
    %15 = vector.shape_cast %2 : vector<32xf32> to vector<1x32x1xf32>
    %16 = vector.extract_strided_slice %10 {offsets = [0, 0, 0], sizes = [4, 1, 32], strides = [1, 1, 1]} : vector<4x4x32xf32> to vector<4x1x32xf32>
    %17 = vector.shape_cast %16 : vector<4x1x32xf32> to vector<4x32xf32>
    %18 = vector.extract_strided_slice %14 {offsets = [0, 0, 0], sizes = [16, 1, 32], strides = [1, 1, 1]} : vector<16x4x32xf32> to vector<16x1x32xf32>
    %19 = vector.shape_cast %18 : vector<16x1x32xf32> to vector<16x32xf32>
    %20 = tpu.transpose %19, [1, 0] : vector<16x32xf32> -> vector<32x16xf32>
    %21 = vector.shape_cast %17 : vector<4x32xf32> to vector<4x32x1xf32>
    %22 = vector.shape_cast %20 : vector<32x16xf32> to vector<1x32x16xf32>
    %23 = vector.broadcast %21 : vector<4x32x1xf32> to vector<4x32x16xf32>
    %24 = vector.broadcast %22 : vector<1x32x16xf32> to vector<4x32x16xf32>
    %25 = arith.addf %23, %24 : vector<4x32x16xf32>
    %26 = math.tanh %25 : vector<4x32x16xf32>
    %27 = vector.broadcast %15 : vector<1x32x1xf32> to vector<4x32x16xf32>
    %28 = arith.mulf %26, %27 : vector<4x32x16xf32>
    %cst_15 = arith.constant dense<0.000000e+00> : vector<4x16xf32>
    %29 = vector.multi_reduction <add>, %28, %cst_15 [1] : vector<4x32x16xf32> to vector<4x16xf32>
    %30 = vector.extract_strided_slice %6 {offsets = [0, 0], sizes = [1, 16], strides = [1, 1]} : vector<4x16xf32> to vector<1x16xf32>
    %31 = vector.shape_cast %30 : vector<1x16xf32> to vector<16xf32>
    %32 = vector.shape_cast %31 : vector<16xf32> to vector<1x16xf32>
    %cst_16 = arith.constant 0.000000e+00 : f32
    %33 = vector.broadcast %cst_16 : f32 to vector<1x16xf32>
    %34 = arith.cmpf ogt, %32, %33 : vector<1x16xf32>
    %cst_17 = arith.constant -1.000000e+30 : f32
    %35 = vector.shape_cast %34 : vector<1x16xi1> to vector<1x16xi1>
    %36 = vector.broadcast %35 : vector<1x16xi1> to vector<4x16xi1>
    %37 = vector.broadcast %cst_17 : f32 to vector<4x16xf32>
    %38 = arith.select %36, %29, %37 : vector<4x16xi1>, vector<4x16xf32>
    %cst_18 = arith.constant dense<0xFF800000> : vector<4xf32>
    %39 = vector.multi_reduction <maximumf>, %38, %cst_18 [1] : vector<4x16xf32> to vector<4xf32>
    %40 = vector.shape_cast %39 : vector<4xf32> to vector<4x1xf32>
    %41 = vector.broadcast %40 : vector<4x1xf32> to vector<4x16xf32>
    %42 = arith.subf %38, %41 : vector<4x16xf32>
    %43 = math.exp %42 : vector<4x16xf32>
    %cst_19 = arith.constant dense<0.000000e+00> : vector<4xf32>
    %44 = vector.multi_reduction <add>, %43, %cst_19 [1] : vector<4x16xf32> to vector<4xf32>
    %45 = vector.shape_cast %44 : vector<4xf32> to vector<4x1xf32>
    %cst_20 = arith.constant 1.000000e+00 : f32
    %46 = vector.broadcast %cst_20 : f32 to vector<4x1xf32>
    %47 = arith.divf %46, %45 : vector<4x1xf32>
    %48 = vector.broadcast %47 : vector<4x1xf32> to vector<4x16xf32>
    %49 = arith.mulf %43, %48 : vector<4x16xf32>
    %50 = vector.extract_strided_slice %4 {offsets = [0, 0, 0], sizes = [16, 1, 32], strides = [1, 1, 1]} : vector<16x4x32xf32> to vector<16x1x32xf32>
    %51 = vector.shape_cast %50 : vector<16x1x32xf32> to vector<16x32xf32>
    %cst_21 = arith.constant dense<0.000000e+00> : vector<4x32xf32>
    %52 = tpu.matmul %49, %51, %cst_21 {dimension_numbers = #tpu.dot_dimension_numbers<[1], [0], [0], [1], [0, 0, 1, 1], [], []>} : vector<4x16xf32>, vector<16x32xf32>, vector<4x32xf32> -> vector<4x32xf32>
    %53 = vector.extract_strided_slice %3 {offsets = [0, 0, 0], sizes = [4, 1, 32], strides = [1, 1, 1]} : vector<4x4x32xf32> to vector<4x1x32xf32>
    %54 = vector.shape_cast %53 : vector<4x1x32xf32> to vector<4x32xf32>
    %55 = vector.extract_strided_slice %10 {offsets = [0, 1, 0], sizes = [4, 1, 32], strides = [1, 1, 1]} : vector<4x4x32xf32> to vector<4x1x32xf32>
    %56 = vector.shape_cast %55 : vector<4x1x32xf32> to vector<4x32xf32>
    %57 = vector.extract_strided_slice %14 {offsets = [0, 1, 0], sizes = [16, 1, 32], strides = [1, 1, 1]} : vector<16x4x32xf32> to vector<16x1x32xf32>
    %58 = vector.shape_cast %57 : vector<16x1x32xf32> to vector<16x32xf32>
    %59 = tpu.transpose %58, [1, 0] : vector<16x32xf32> -> vector<32x16xf32>
    %60 = vector.shape_cast %56 : vector<4x32xf32> to vector<4x32x1xf32>
    %61 = vector.shape_cast %59 : vector<32x16xf32> to vector<1x32x16xf32>
    %62 = vector.broadcast %60 : vector<4x32x1xf32> to vector<4x32x16xf32>
    %63 = vector.broadcast %61 : vector<1x32x16xf32> to vector<4x32x16xf32>
    %64 = arith.addf %62, %63 : vector<4x32x16xf32>
    %65 = math.tanh %64 : vector<4x32x16xf32>
    %66 = vector.broadcast %15 : vector<1x32x1xf32> to vector<4x32x16xf32>
    %67 = arith.mulf %65, %66 : vector<4x32x16xf32>
    %cst_22 = arith.constant dense<0.000000e+00> : vector<4x16xf32>
    %68 = vector.multi_reduction <add>, %67, %cst_22 [1] : vector<4x32x16xf32> to vector<4x16xf32>
    %69 = vector.extract_strided_slice %6 {offsets = [1, 0], sizes = [1, 16], strides = [1, 1]} : vector<4x16xf32> to vector<1x16xf32>
    %70 = vector.shape_cast %69 : vector<1x16xf32> to vector<16xf32>
    %71 = vector.shape_cast %70 : vector<16xf32> to vector<1x16xf32>
    %cst_23 = arith.constant 0.000000e+00 : f32
    %72 = vector.broadcast %cst_23 : f32 to vector<1x16xf32>
    %73 = arith.cmpf ogt, %71, %72 : vector<1x16xf32>
    %cst_24 = arith.constant -1.000000e+30 : f32
    %74 = vector.shape_cast %73 : vector<1x16xi1> to vector<1x16xi1>
    %75 = vector.broadcast %74 : vector<1x16xi1> to vector<4x16xi1>
    %76 = vector.broadcast %cst_24 : f32 to vector<4x16xf32>
    %77 = arith.select %75, %68, %76 : vector<4x16xi1>, vector<4x16xf32>
    %cst_25 = arith.constant dense<0xFF800000> : vector<4xf32>
    %78 = vector.multi_reduction <maximumf>, %77, %cst_25 [1] : vector<4x16xf32> to vector<4xf32>
    %79 = vector.shape_cast %78 : vector<4xf32> to vector<4x1xf32>
    %80 = vector.broadcast %79 : vector<4x1xf32> to vector<4x16xf32>
    %81 = arith.subf %77, %80 : vector<4x16xf32>
    %82 = math.exp %81 : vector<4x16xf32>
    %cst_26 = arith.constant dense<0.000000e+00> : vector<4xf32>
    %83 = vector.multi_reduction <add>, %82, %cst_26 [1] : vector<4x16xf32> to vector<4xf32>
    %84 = vector.shape_cast %83 : vector<4xf32> to vector<4x1xf32>
    %cst_27 = arith.constant 1.000000e+00 : f32
    %85 = vector.broadcast %cst_27 : f32 to vector<4x1xf32>
    %86 = arith.divf %85, %84 : vector<4x1xf32>
    %87 = vector.broadcast %86 : vector<4x1xf32> to vector<4x16xf32>
    %88 = arith.mulf %82, %87 : vector<4x16xf32>
    %89 = vector.extract_strided_slice %4 {offsets = [0, 1, 0], sizes = [16, 1, 32], strides = [1, 1, 1]} : vector<16x4x32xf32> to vector<16x1x32xf32>
    %90 = vector.shape_cast %89 : vector<16x1x32xf32> to vector<16x32xf32>
    %cst_28 = arith.constant dense<0.000000e+00> : vector<4x32xf32>
    %91 = tpu.matmul %88, %90, %cst_28 {dimension_numbers = #tpu.dot_dimension_numbers<[1], [0], [0], [1], [0, 0, 1, 1], [], []>} : vector<4x16xf32>, vector<16x32xf32>, vector<4x32xf32> -> vector<4x32xf32>
    %92 = vector.extract_strided_slice %3 {offsets = [0, 1, 0], sizes = [4, 1, 32], strides = [1, 1, 1]} : vector<4x4x32xf32> to vector<4x1x32xf32>
    %93 = vector.shape_cast %92 : vector<4x1x32xf32> to vector<4x32xf32>
    %94 = vector.extract_strided_slice %10 {offsets = [0, 2, 0], sizes = [4, 1, 32], strides = [1, 1, 1]} : vector<4x4x32xf32> to vector<4x1x32xf32>
    %95 = vector.shape_cast %94 : vector<4x1x32xf32> to vector<4x32xf32>
    %96 = vector.extract_strided_slice %14 {offsets = [0, 2, 0], sizes = [16, 1, 32], strides = [1, 1, 1]} : vector<16x4x32xf32> to vector<16x1x32xf32>
    %97 = vector.shape_cast %96 : vector<16x1x32xf32> to vector<16x32xf32>
    %98 = tpu.transpose %97, [1, 0] : vector<16x32xf32> -> vector<32x16xf32>
    %99 = vector.shape_cast %95 : vector<4x32xf32> to vector<4x32x1xf32>
    %100 = vector.shape_cast %98 : vector<32x16xf32> to vector<1x32x16xf32>
    %101 = vector.broadcast %99 : vector<4x32x1xf32> to vector<4x32x16xf32>
    %102 = vector.broadcast %100 : vector<1x32x16xf32> to vector<4x32x16xf32>
    %103 = arith.addf %101, %102 : vector<4x32x16xf32>
    %104 = math.tanh %103 : vector<4x32x16xf32>
    %105 = vector.broadcast %15 : vector<1x32x1xf32> to vector<4x32x16xf32>
    %106 = arith.mulf %104, %105 : vector<4x32x16xf32>
    %cst_29 = arith.constant dense<0.000000e+00> : vector<4x16xf32>
    %107 = vector.multi_reduction <add>, %106, %cst_29 [1] : vector<4x32x16xf32> to vector<4x16xf32>
    %108 = vector.extract_strided_slice %6 {offsets = [2, 0], sizes = [1, 16], strides = [1, 1]} : vector<4x16xf32> to vector<1x16xf32>
    %109 = vector.shape_cast %108 : vector<1x16xf32> to vector<16xf32>
    %110 = vector.shape_cast %109 : vector<16xf32> to vector<1x16xf32>
    %cst_30 = arith.constant 0.000000e+00 : f32
    %111 = vector.broadcast %cst_30 : f32 to vector<1x16xf32>
    %112 = arith.cmpf ogt, %110, %111 : vector<1x16xf32>
    %cst_31 = arith.constant -1.000000e+30 : f32
    %113 = vector.shape_cast %112 : vector<1x16xi1> to vector<1x16xi1>
    %114 = vector.broadcast %113 : vector<1x16xi1> to vector<4x16xi1>
    %115 = vector.broadcast %cst_31 : f32 to vector<4x16xf32>
    %116 = arith.select %114, %107, %115 : vector<4x16xi1>, vector<4x16xf32>
    %cst_32 = arith.constant dense<0xFF800000> : vector<4xf32>
    %117 = vector.multi_reduction <maximumf>, %116, %cst_32 [1] : vector<4x16xf32> to vector<4xf32>
    %118 = vector.shape_cast %117 : vector<4xf32> to vector<4x1xf32>
    %119 = vector.broadcast %118 : vector<4x1xf32> to vector<4x16xf32>
    %120 = arith.subf %116, %119 : vector<4x16xf32>
    %121 = math.exp %120 : vector<4x16xf32>
    %cst_33 = arith.constant dense<0.000000e+00> : vector<4xf32>
    %122 = vector.multi_reduction <add>, %121, %cst_33 [1] : vector<4x16xf32> to vector<4xf32>
    %123 = vector.shape_cast %122 : vector<4xf32> to vector<4x1xf32>
    %cst_34 = arith.constant 1.000000e+00 : f32
    %124 = vector.broadcast %cst_34 : f32 to vector<4x1xf32>
    %125 = arith.divf %124, %123 : vector<4x1xf32>
    %126 = vector.broadcast %125 : vector<4x1xf32> to vector<4x16xf32>
    %127 = arith.mulf %121, %126 : vector<4x16xf32>
    %128 = vector.extract_strided_slice %4 {offsets = [0, 2, 0], sizes = [16, 1, 32], strides = [1, 1, 1]} : vector<16x4x32xf32> to vector<16x1x32xf32>
    %129 = vector.shape_cast %128 : vector<16x1x32xf32> to vector<16x32xf32>
    %cst_35 = arith.constant dense<0.000000e+00> : vector<4x32xf32>
    %130 = tpu.matmul %127, %129, %cst_35 {dimension_numbers = #tpu.dot_dimension_numbers<[1], [0], [0], [1], [0, 0, 1, 1], [], []>} : vector<4x16xf32>, vector<16x32xf32>, vector<4x32xf32> -> vector<4x32xf32>
    %131 = vector.extract_strided_slice %3 {offsets = [0, 2, 0], sizes = [4, 1, 32], strides = [1, 1, 1]} : vector<4x4x32xf32> to vector<4x1x32xf32>
    %132 = vector.shape_cast %131 : vector<4x1x32xf32> to vector<4x32xf32>
    %133 = vector.extract_strided_slice %10 {offsets = [0, 3, 0], sizes = [4, 1, 32], strides = [1, 1, 1]} : vector<4x4x32xf32> to vector<4x1x32xf32>
    %134 = vector.shape_cast %133 : vector<4x1x32xf32> to vector<4x32xf32>
    %135 = vector.extract_strided_slice %14 {offsets = [0, 3, 0], sizes = [16, 1, 32], strides = [1, 1, 1]} : vector<16x4x32xf32> to vector<16x1x32xf32>
    %136 = vector.shape_cast %135 : vector<16x1x32xf32> to vector<16x32xf32>
    %137 = tpu.transpose %136, [1, 0] : vector<16x32xf32> -> vector<32x16xf32>
    %138 = vector.shape_cast %134 : vector<4x32xf32> to vector<4x32x1xf32>
    %139 = vector.shape_cast %137 : vector<32x16xf32> to vector<1x32x16xf32>
    %140 = vector.broadcast %138 : vector<4x32x1xf32> to vector<4x32x16xf32>
    %141 = vector.broadcast %139 : vector<1x32x16xf32> to vector<4x32x16xf32>
    %142 = arith.addf %140, %141 : vector<4x32x16xf32>
    %143 = math.tanh %142 : vector<4x32x16xf32>
    %144 = vector.broadcast %15 : vector<1x32x1xf32> to vector<4x32x16xf32>
    %145 = arith.mulf %143, %144 : vector<4x32x16xf32>
    %cst_36 = arith.constant dense<0.000000e+00> : vector<4x16xf32>
    %146 = vector.multi_reduction <add>, %145, %cst_36 [1] : vector<4x32x16xf32> to vector<4x16xf32>
    %147 = vector.extract_strided_slice %6 {offsets = [3, 0], sizes = [1, 16], strides = [1, 1]} : vector<4x16xf32> to vector<1x16xf32>
    %148 = vector.shape_cast %147 : vector<1x16xf32> to vector<16xf32>
    %149 = vector.shape_cast %148 : vector<16xf32> to vector<1x16xf32>
    %cst_37 = arith.constant 0.000000e+00 : f32
    %150 = vector.broadcast %cst_37 : f32 to vector<1x16xf32>
    %151 = arith.cmpf ogt, %149, %150 : vector<1x16xf32>
    %cst_38 = arith.constant -1.000000e+30 : f32
    %152 = vector.shape_cast %151 : vector<1x16xi1> to vector<1x16xi1>
    %153 = vector.broadcast %152 : vector<1x16xi1> to vector<4x16xi1>
    %154 = vector.broadcast %cst_38 : f32 to vector<4x16xf32>
    %155 = arith.select %153, %146, %154 : vector<4x16xi1>, vector<4x16xf32>
    %cst_39 = arith.constant dense<0xFF800000> : vector<4xf32>
    %156 = vector.multi_reduction <maximumf>, %155, %cst_39 [1] : vector<4x16xf32> to vector<4xf32>
    %157 = vector.shape_cast %156 : vector<4xf32> to vector<4x1xf32>
    %158 = vector.broadcast %157 : vector<4x1xf32> to vector<4x16xf32>
    %159 = arith.subf %155, %158 : vector<4x16xf32>
    %160 = math.exp %159 : vector<4x16xf32>
    %cst_40 = arith.constant dense<0.000000e+00> : vector<4xf32>
    %161 = vector.multi_reduction <add>, %160, %cst_40 [1] : vector<4x16xf32> to vector<4xf32>
    %162 = vector.shape_cast %161 : vector<4xf32> to vector<4x1xf32>
    %cst_41 = arith.constant 1.000000e+00 : f32
    %163 = vector.broadcast %cst_41 : f32 to vector<4x1xf32>
    %164 = arith.divf %163, %162 : vector<4x1xf32>
    %165 = vector.broadcast %164 : vector<4x1xf32> to vector<4x16xf32>
    %166 = arith.mulf %160, %165 : vector<4x16xf32>
    %167 = vector.extract_strided_slice %4 {offsets = [0, 3, 0], sizes = [16, 1, 32], strides = [1, 1, 1]} : vector<16x4x32xf32> to vector<16x1x32xf32>
    %168 = vector.shape_cast %167 : vector<16x1x32xf32> to vector<16x32xf32>
    %cst_42 = arith.constant dense<0.000000e+00> : vector<4x32xf32>
    %169 = tpu.matmul %166, %168, %cst_42 {dimension_numbers = #tpu.dot_dimension_numbers<[1], [0], [0], [1], [0, 0, 1, 1], [], []>} : vector<4x16xf32>, vector<16x32xf32>, vector<4x32xf32> -> vector<4x32xf32>
    %170 = vector.extract_strided_slice %3 {offsets = [0, 3, 0], sizes = [4, 1, 32], strides = [1, 1, 1]} : vector<4x4x32xf32> to vector<4x1x32xf32>
    %171 = vector.shape_cast %170 : vector<4x1x32xf32> to vector<4x32xf32>
    %172 = tpu.concatenate %52, %54, %91, %93, %130, %132, %169, %171 in 1 : vector<4x32xf32>, vector<4x32xf32>, vector<4x32xf32>, vector<4x32xf32>, vector<4x32xf32>, vector<4x32xf32>, vector<4x32xf32>, vector<4x32xf32> -> vector<4x256xf32>
    %c0_43 = arith.constant 0 : index
    %c0_44 = arith.constant 0 : index
    %c0_45 = arith.constant 0 : index
    %173 = vector.load %arg7[%c0_43, %c0_44, %c0_45] : memref<1x4x256xf32, #tpu.memory_space<vmem>>, vector<1x4x256xf32>
    %174 = vector.shape_cast %173 : vector<1x4x256xf32> to vector<4x256xf32>
    %175 = vector.shape_cast %172 : vector<4x256xf32> to vector<1x4x256xf32>
    tpu.vector_store %arg7[%c0_43, %c0_44, %c0_45], %175 {strides = array<i32>} : memref<1x4x256xf32, #tpu.memory_space<vmem>>, vector<1x4x256xf32>,
    return
  }
  func.func @transform_0(%arg0: i32) -> (i32, i32, i32) {
    %c0_i32 = arith.constant 0 : i32
    %c0_i32_0 = arith.constant 0 : i32
    %c0_i32_1 = arith.constant 0 : i32
    return %arg0, %c0_i32, %c0_i32_0 : i32, i32, i32
  }
  func.func @transform_1(%arg0: i32) -> (i32, i32, i32) {
    %c0_i32 = arith.constant 0 : i32
    %c0_i32_0 = arith.constant 0 : i32
    %c0_i32_1 = arith.constant 0 : i32
    %c0_i32_2 = arith.constant 0 : i32
    return %c0_i32, %c0_i32_0, %c0_i32_1 : i32, i32, i32
  }
  func.func @transform_2(%arg0: i32) -> (i32, i32, i32) {
    %c0_i32 = arith.constant 0 : i32
    %c0_i32_0 = arith.constant 0 : i32
    %c0_i32_1 = arith.constant 0 : i32
    %c0_i32_2 = arith.constant 0 : i32
    return %c0_i32, %c0_i32_0, %c0_i32_1 : i32, i32, i32
  }
  func.func @transform_3(%arg0: i32) -> (i32, i32) {
    %c0_i32 = arith.constant 0 : i32
    %c0_i32_0 = arith.constant 0 : i32
    %c0_i32_1 = arith.constant 0 : i32
    return %c0_i32, %c0_i32_0 : i32, i32
  }
  func.func @transform_4(%arg0: i32) -> (i32, i32) {
    %c0_i32 = arith.constant 0 : i32
    %c0_i32_0 = arith.constant 0 : i32
    %c0_i32_1 = arith.constant 0 : i32
    return %c0_i32, %c0_i32_0 : i32, i32
  }
  func.func @transform_5(%arg0: i32) -> (i32, i32) {
    %c0_i32 = arith.constant 0 : i32
    %c0_i32_0 = arith.constant 0 : i32
    %c0_i32_1 = arith.constant 0 : i32
    return %c0_i32, %c0_i32_0 : i32, i32
  }
  func.func @transform_6(%arg0: i32) -> (i32, i32, i32) {
    %c0_i32 = arith.constant 0 : i32
    %c0_i32_0 = arith.constant 0 : i32
    %c0_i32_1 = arith.constant 0 : i32
    return %arg0, %c0_i32, %c0_i32_0 : i32, i32, i32
  }
}

</mosaic_0001>

<llo_original>
// kernel: tpu_custom_call.1
$region0: #{tpu_custom_call.1}
  #allocation0 [shape = 'u32[]', space=smem, size = 0x4, offset = 0x4, fixed_abs, tag = 'smem constant byte address 0x4 - core index']
  #allocation1 [shape = 'u32[144,128]{1,0:T(1,128)}', space=vmem, size = 0x12000, scoped, tag = 'internal scratch']
  %s0 = inlined_call_operand.vmem [shape: f32[16,4,32], index: 0, kind: input, shape index: {}]
  %s1 = inlined_call_operand.hbm [shape: f32[16,4,32], index: 1, kind: input, shape index: {}]
  %s2 = inlined_call_operand.hbm [shape: f32[16,4,48], index: 2, kind: input, shape index: {}]
  %s3 = inlined_call_operand.vmem [shape: f32[4,16], index: 3, kind: input, shape index: {}]
  %s4 = inlined_call_operand.vmem [shape: f32[80,32], index: 4, kind: input, shape index: {}]
  %s5 = inlined_call_operand.vmem [shape: f32[1,32], index: 5, kind: input, shape index: {}]
  %s6 = inlined_call_operand.hbm [shape: f32[4,4,256], index: 6, kind: output, shape index: {}]
  %s7 = sld [smem:[#allocation0]]
  $region65: #{tpu_custom_call.1} parent=0
    _
  %s9 = ssub.s32 1, %s7
  %s10 = scalar_select 0, %s9, %s7
  $region1: #{tpu_custom_call.1} parent=0
    #allocation2 [shape = 'u8[32768]{0}', space=vmem, size = 0x8000, scoped, tag = 'input window, operand 1, single buffered']
    #allocation3 [shape = 's32[2]{0}', space=sflag, size = 0x8, scoped, tag = 'scoped memory for tpu_custom_call.1']
    #allocation4 [shape = 's32[2]{0}', space=sflag, size = 0x8, scoped, tag = 'scoped memory for tpu_custom_call.1']
    #allocation5 [shape = 'u8[32768]{0}', space=vmem, size = 0x8000, scoped, tag = 'input window, operand 2, single buffered']
    #allocation6 [shape = 's32[1]{0}', space=sflag, size = 0x4, scoped, tag = 'scoped memory for tpu_custom_call.1']
    #allocation7 [shape = 'u8[8192]{0}', space=vmem, size = 0x2000, scoped, tag = 'output window, operand 0']
    %11 = vsyncpa [#allocation3], 0
    %12 = vsyncpa [#allocation6], 0
    %13 = vsyncpa [#allocation4], 0
    %s14 = scalar_lea.sflag [#allocation4], 1
    %15 = vsyncpa %s14, 0
    loop: start=0, step=1, limit=6
    $region2: #{tpu_custom_call.1} parent=1 // loop_pre_header
      _
    $region3: #{tpu_custom_call.1} parent=1 // loop_header
      %s17 = sphi 0, %s21
      %p18 = scmp.ge.s32.totalorder %s17, 6
      %s27 = sphi 0, %s29
      %s30 = sphi 0, %s27
      %s31 = sphi 0, %s30
      %s47 = sphi 0, %s31
      %s51 = sphi 0, %s51
      %s53 = sphi 0, %s51
      %s54 = sphi 0, %s53
      %s68 = sphi 0, %s54
      %s72 = sphi 0, %s72
      %s74 = sphi 0, %s72
      %s75 = sphi 0, %s74
      %s89 = sphi 0, %s75
      %s93 = sphi 0, %s93
      %s95 = sphi 0, %s93
      %s96 = sphi 0, %s95
      %s110 = sphi 0, %s96
      %s114 = sphi 0, %s114
      %s116 = sphi 0, %s114
      %s117 = sphi 0, %s116
      %s131 = sphi 0, %s117
      %s135 = sphi 0, %s135
      %s137 = sphi 0, %s135
      %s138 = sphi 0, %s137
      %s152 = sphi 0, %s138
      %s158 = sphi 0, %s160
      %s161 = sphi 0, %s158
      %s162 = sphi 0, %s161
      %s178 = sphi 0, %s162
    $region4: #{tpu_custom_call.1} parent=1 // loop_header_branch
      %20 = sbr.rel (%p18) target = $region8
    $region5: #{tpu_custom_call.1} parent=1 // loop_body
      %s22 = ssub.s32 %s17, 1
      %s23 = ssub.s32 %s17, 2
      %s24 = sadd.s32 %s17, 1
      %s25 = ssub.s32 %s17, %s24
      %p26 = scmp.eq.s32.totalorder %s25, 0
      %s28 = sadd.s32 %s27, 1
      %s29 = scalar_select %p26, %s27, %s28
      %p32 = pneg %p26
      %p33 = scmp.eq.s32.totalorder %s17, 3
      %p34 = por %p32, %p33
      %p35 = scmp.ne.s32.totalorder %s27, %s30
      %p36 = scmp.eq.s32.totalorder %s17, 0
      %p37 = por %p35, %p36
      %p38 = scmp.ne.s32.totalorder %s27, %s30
      %p39 = scmp.eq.s32.totalorder %s22, 3
      %p40 = por %p38, %p39
      %p41 = scmp.ne.s32.totalorder %s30, %s31
      %p42 = scmp.eq.s32.totalorder %s22, 0
      %p43 = por %p41, %p42
      %p44 = scmp.ne.s32.totalorder %s30, %s31
      %p45 = scmp.eq.s32.totalorder %s23, 3
      %p46 = por %p44, %p45
      %p48 = scmp.ne.s32.totalorder %s31, %s47
      %p49 = scmp.eq.s32.totalorder %s23, 0
      %p50 = por %p48, %p49
      %s52 = sadd.s32 %s51, 1
      %p55 = scmp.eq.s32.totalorder %s17, 3
      %p56 = scmp.ne.s32.totalorder %s51, %s53
      %p57 = scmp.eq.s32.totalorder %s17, 0
      %p58 = por %p56, %p57
      %p59 = scmp.ne.s32.totalorder %s51, %s53
      %p60 = scmp.eq.s32.totalorder %s22, 3
      %p61 = por %p59, %p60
      %p62 = scmp.ne.s32.totalorder %s53, %s54
      %p63 = scmp.eq.s32.totalorder %s22, 0
      %p64 = por %p62, %p63
      %p65 = scmp.ne.s32.totalorder %s53, %s54
      %p66 = scmp.eq.s32.totalorder %s23, 3
      %p67 = por %p65, %p66
      %p69 = scmp.ne.s32.totalorder %s54, %s68
      %p70 = scmp.eq.s32.totalorder %s23, 0
      %p71 = por %p69, %p70
      %s73 = sadd.s32 %s72, 1
      %p76 = scmp.eq.s32.totalorder %s17, 3
      %p77 = scmp.ne.s32.totalorder %s72, %s74
      %p78 = scmp.eq.s32.totalorder %s17, 0
      %p79 = por %p77, %p78
      %p80 = scmp.ne.s32.totalorder %s72, %s74
      %p81 = scmp.eq.s32.totalorder %s22, 3
      %p82 = por %p80, %p81
      %p83 = scmp.ne.s32.totalorder %s74, %s75
      %p84 = scmp.eq.s32.totalorder %s22, 0
      %p85 = por %p83, %p84
      %p86 = scmp.ne.s32.totalorder %s74, %s75
      %p87 = scmp.eq.s32.totalorder %s23, 3
      %p88 = por %p86, %p87
      %p90 = scmp.ne.s32.totalorder %s75, %s89
      %p91 = scmp.eq.s32.totalorder %s23, 0
      %p92 = por %p90, %p91
      %s94 = sadd.s32 %s93, 1
      %p97 = scmp.eq.s32.totalorder %s17, 3
      %p98 = scmp.ne.s32.totalorder %s93, %s95
      %p99 = scmp.eq.s32.totalorder %s17, 0
      %p100 = por %p98, %p99
      %p101 = scmp.ne.s32.totalorder %s93, %s95
      %p102 = scmp.eq.s32.totalorder %s22, 3
      %p103 = por %p101, %p102
      %p104 = scmp.ne.s32.totalorder %s95, %s96
      %p105 = scmp.eq.s32.totalorder %s22, 0
      %p106 = por %p104, %p105
      %p107 = scmp.ne.s32.totalorder %s95, %s96
      %p108 = scmp.eq.s32.totalorder %s23, 3
      %p109 = por %p107, %p108
      %p111 = scmp.ne.s32.totalorder %s96, %s110
      %p112 = scmp.eq.s32.totalorder %s23, 0
      %p113 = por %p111, %p112
      %s115 = sadd.s32 %s114, 1
      %p118 = scmp.eq.s32.totalorder %s17, 3
      %p119 = scmp.ne.s32.totalorder %s114, %s116
      %p120 = scmp.eq.s32.totalorder %s17, 0
      %p121 = por %p119, %p120
      %p122 = scmp.ne.s32.totalorder %s114, %s116
      %p123 = scmp.eq.s32.totalorder %s22, 3
      %p124 = por %p122, %p123
      %p125 = scmp.ne.s32.totalorder %s116, %s117
      %p126 = scmp.eq.s32.totalorder %s22, 0
      %p127 = por %p125, %p126
      %p128 = scmp.ne.s32.totalorder %s116, %s117
      %p129 = scmp.eq.s32.totalorder %s23, 3
      %p130 = por %p128, %p129
      %p132 = scmp.ne.s32.totalorder %s117, %s131
      %p133 = scmp.eq.s32.totalorder %s23, 0
      %p134 = por %p132, %p133
      %s136 = sadd.s32 %s135, 1
      %p139 = scmp.eq.s32.totalorder %s17, 3
      %p140 = scmp.ne.s32.totalorder %s135, %s137
      %p141 = scmp.eq.s32.totalorder %s17, 0
      %p142 = por %p140, %p141
      %p143 = scmp.ne.s32.totalorder %s135, %s137
      %p144 = scmp.eq.s32.totalorder %s22, 3
      %p145 = por %p143, %p144
      %p146 = scmp.ne.s32.totalorder %s137, %s138
      %p147 = scmp.eq.s32.totalorder %s22, 0
      %p148 = por %p146, %p147
      %p149 = scmp.ne.s32.totalorder %s137, %s138
      %p150 = scmp.eq.s32.totalorder %s23, 3
      %p151 = por %p149, %p150
      %p153 = scmp.ne.s32.totalorder %s138, %s152
      %p154 = scmp.eq.s32.totalorder %s23, 0
      %p155 = por %p153, %p154
      %s156 = ssub.s32 %s17, %s24
      %p157 = scmp.eq.s32.totalorder %s156, 0
      %s159 = sadd.s32 %s158, 1
      %s160 = scalar_select %p157, %s158, %s159
      %p163 = pneg %p157
      %p164 = scmp.eq.s32.totalorder %s17, 3
      %p165 = por %p163, %p164
      %p166 = scmp.ne.s32.totalorder %s158, %s161
      %p167 = scmp.eq.s32.totalorder %s17, 0
      %p168 = por %p166, %p167
      %p169 = scmp.ne.s32.totalorder %s158, %s161
      %p170 = scmp.eq.s32.totalorder %s22, 3
      %p171 = por %p169, %p170
      %p172 = scmp.ne.s32.totalorder %s161, %s162
      %p173 = scmp.eq.s32.totalorder %s22, 0
      %p174 = por %p172, %p173
      %p175 = scmp.ne.s32.totalorder %s161, %s162
      %p176 = scmp.eq.s32.totalorder %s23, 3
      %p177 = por %p175, %p176
      %p179 = scmp.ne.s32.totalorder %s162, %s178
      %p180 = scmp.eq.s32.totalorder %s23, 0
      %p181 = por %p179, %p180
      %p182 = scmp.le.s32.totalorder 1, %s17
      %p183 = scmp.lt.s32.totalorder %s17, 5
      %p184 = pnand %p182, %p183
      %p185 = pneg %p184
      // Predicated region
      $region9: #{tpu_custom_call.1} parent=5 // pred_check
        _
      $region10: #{tpu_custom_call.1} parent=5 // pred_check_branch
        %187 = sbr.rel (%p184) target = $region12
      $region11: #{tpu_custom_call.1} parent=5 // pred_region
        %s188 = ssub.s32 %s17, 1
        // Predicated region
        $region13: #{tpu_custom_call.1} parent=11 // pred_check
          %p189 = pneg %p64
        $region14: #{tpu_custom_call.1} parent=11 // pred_check_branch
          %191 = sbr.rel (%p189) target = $region16
        $region15: #{tpu_custom_call.1} parent=11 // pred_region
          %s193 = ssub.s32 1024, 1024
          %194 = vsyncadd [#allocation3], %s193
          %s195 = sshll.u32 [#allocation2], 4
          %s196 = int_to_ptr.vmem [resolvable:$true] %s195
          %201 = dma.hbm_to_vmem [thread:$0]  %s1, 1024, %s196, [#allocation3], 64, 64, 4
        $region16: #{tpu_custom_call.1} parent=11 // pred_fallthru
          _
        // Predicated region
        $region17: #{tpu_custom_call.1} parent=11 // pred_check
          %p202 = pneg %p85
        $region18: #{tpu_custom_call.1} parent=11 // pred_check_branch
          %204 = sbr.rel (%p202) target = $region20
        $region19: #{tpu_custom_call.1} parent=11 // pred_region
          %s206 = ssub.s32 1024, 1024
          %207 = vsyncadd [#allocation6], %s206
          %s208 = sshll.u32 [#allocation5], 4
          %s209 = int_to_ptr.vmem [resolvable:$true] %s208
          %214 = dma.hbm_to_vmem [thread:$0]  %s2, 1024, %s209, [#allocation6], 64, 64, 4
        $region20: #{tpu_custom_call.1} parent=11 // pred_fallthru
          _
        // Predicated region
        $region21: #{tpu_custom_call.1} parent=11 // pred_check
          %p215 = pneg %p106
        $region22: #{tpu_custom_call.1} parent=11 // pred_check_branch
          %217 = sbr.rel (%p215) target = $region24
        $region23: #{tpu_custom_call.1} parent=11 // pred_region
          _
        $region24: #{tpu_custom_call.1} parent=11 // pred_fallthru
          _
        // Predicated region
        $region25: #{tpu_custom_call.1} parent=11 // pred_check
          %p218 = pneg %p127
        $region26: #{tpu_custom_call.1} parent=11 // pred_check_branch
          %220 = sbr.rel (%p218) target = $region28
        $region27: #{tpu_custom_call.1} parent=11 // pred_region
          _
        $region28: #{tpu_custom_call.1} parent=11 // pred_fallthru
          _
        // Predicated region
        $region29: #{tpu_custom_call.1} parent=11 // pred_check
          %p221 = pneg %p148
        $region30: #{tpu_custom_call.1} parent=11 // pred_check_branch
          %223 = sbr.rel (%p221) target = $region32
        $region31: #{tpu_custom_call.1} parent=11 // pred_region
          _
        $region32: #{tpu_custom_call.1} parent=11 // pred_fallthru
          _
      $region12: #{tpu_custom_call.1} parent=5 // pred_fallthru
        _
      %p224 = scmp.lt.s32.totalorder %s17, 4
      // Predicated region
      $region33: #{tpu_custom_call.1} parent=5 // pred_check
        %p225 = pneg %p224
      $region34: #{tpu_custom_call.1} parent=5 // pred_check_branch
        %227 = sbr.rel (%p225) target = $region36
      $region35: #{tpu_custom_call.1} parent=5 // pred_region
        // Predicated region
        $region37: #{tpu_custom_call.1} parent=35 // pred_check
          %p228 = pneg %p37
        $region38: #{tpu_custom_call.1} parent=35 // pred_check_branch
          %230 = sbr.rel (%p228) target = $region40
        $region39: #{tpu_custom_call.1} parent=35 // pred_region
          %s231 = smul.u32 4, %s17
          %p232 = scmp.lt.s32.totalorder %s231, 15
          %s233 = scalar_select %p232, %s231, 15
          %s234 = smul.addr %s233, 4
          %s235 = scalar_lea.vmem %s0, %s234
          %s236 = smul.u32 4, %s17
        $region40: #{tpu_custom_call.1} parent=35 // pred_fallthru
          _
      $region36: #{tpu_custom_call.1} parent=5 // pred_fallthru
        _
      %p237 = scmp.le.s32.totalorder 1, %s17
      %p238 = scmp.lt.s32.totalorder %s17, 5
      %p239 = pnand %p237, %p238
      %p240 = pneg %p239
      // Predicated region
      $region41: #{tpu_custom_call.1} parent=5 // pred_check
        _
      $region42: #{tpu_custom_call.1} parent=5 // pred_check_branch
        %242 = sbr.rel (%p239) target = $region44
      $region43: #{tpu_custom_call.1} parent=5 // pred_region
        %s243 = ssub.s32 %s17, 1
        // Predicated region
        $region45: #{tpu_custom_call.1} parent=43 // pred_check
          %p244 = pneg %p64
        $region46: #{tpu_custom_call.1} parent=43 // pred_check_branch
          %246 = sbr.rel (%p244) target = $region48
        $region47: #{tpu_custom_call.1} parent=43 // pred_region
          %247 = dma.done [#allocation3], 1024
        $region48: #{tpu_custom_call.1} parent=43 // pred_fallthru
          _
        // Predicated region
        $region49: #{tpu_custom_call.1} parent=43 // pred_check
          %p248 = pneg %p85
        $region50: #{tpu_custom_call.1} parent=43 // pred_check_branch
          %250 = sbr.rel (%p248) target = $region52
        $region51: #{tpu_custom_call.1} parent=43 // pred_region
          %251 = dma.done [#allocation6], 1024
        $region52: #{tpu_custom_call.1} parent=43 // pred_fallthru
          _
        %s252 = smul.u32 4, %s22
        %p253 = scmp.lt.s32.totalorder %s252, 15
        %s254 = scalar_select %p253, %s252, 15
        %s255 = smul.addr %s254, 4
        %s256 = scalar_lea.vmem %s0, %s255
        %p257 = pneg %p43
        %p258 = pneg %p40
        %p259 = pneg %p64
        %p260 = pneg %p61
        %p261 = pneg %p85
        %p262 = pneg %p82
        %p263 = pneg %p106
        %p264 = pneg %p103
        %p265 = pneg %p127
        %p266 = pneg %p124
        %p267 = pneg %p148
        %p268 = pneg %p145
        %p269 = pneg %p174
        %p270 = pneg %p171
        %s271 = sand.u32 %s161, 1
        %s272 = scalar_lea.sflag [#allocation4], %s271
        %s273 = sand.u32 %s161, 1
        %s274 = smul.addr %s273, 8
        %s275 = scalar_lea.vmem [#allocation7], %s274
        %s276 = smul.u32 4, %s22
        %p277 = scmp.lt.s32.totalorder %s276, 15
        %s278 = scalar_select %p277, %s276, 15
        %s279 = smul.addr %s278, 4
        %s280 = scalar_lea.vmem %s0, %s279
        %s281 = smul.u32 4, %s22
        %v282 = vld [vmem:[%s4] sm:$0xff]
        %v283 = vld [vmem:[%s4 + $0x8] sm:$0xff]
        %v284 = vld [vmem:[%s4 + $0x10] sm:$0xff]
        %v285 = vld [vmem:[%s4 + $0x18] sm:$0xff]
        %v286 = vld [vmem:[%s4 + $0x20] sm:$0xff]
        %v287 = vld [vmem:[%s4 + $0x28] sm:$0xff]
        %v288 = vld [vmem:[%s4 + $0x30] sm:$0xff]
        %v289 = vld [vmem:[%s4 + $0x38] sm:$0xff]
        %v290 = vld [vmem:[%s4 + $0x40] sm:$0xff]
        %v291 = vld [vmem:[%s4 + $0x48] sm:$0xff]
        %v292 = vld [vmem:[%s5] sm:$0x1]
        %v293 = vld [vmem:[%s280] sm:$0xf]
        %v294 = vld [vmem:[%s280 + $0x4] sm:$0xf]
        %v295 = vld [vmem:[%s280 + $0x8] sm:$0xf]
        %v296 = vld [vmem:[%s280 + $0xc] sm:$0xf]
        %v297 = vld [vmem:[#allocation2] sm:$0xf]
        %v298 = vld [vmem:[#allocation2 + $0x4] sm:$0xf]
        %v299 = vld [vmem:[#allocation2 + $0x8] sm:$0xf]
        %v300 = vld [vmem:[#allocation2 + $0xc] sm:$0xf]
        %v301 = vld [vmem:[#allocation2 + $0x10] sm:$0xf]
        %v302 = vld [vmem:[#allocation2 + $0x14] sm:$0xf]
        %v303 = vld [vmem:[#allocation2 + $0x18] sm:$0xf]
        %v304 = vld [vmem:[#allocation2 + $0x1c] sm:$0xf]
        %v305 = vld [vmem:[#allocation2 + $0x20] sm:$0xf]
        %v306 = vld [vmem:[#allocation2 + $0x24] sm:$0xf]
        %v307 = vld [vmem:[#allocation2 + $0x28] sm:$0xf]
        %v308 = vld [vmem:[#allocation2 + $0x2c] sm:$0xf]
        %v309 = vld [vmem:[#allocation2 + $0x30] sm:$0xf]
        %v310 = vld [vmem:[#allocation2 + $0x34] sm:$0xf]
        %v311 = vld [vmem:[#allocation2 + $0x38] sm:$0xf]
        %v312 = vld [vmem:[#allocation2 + $0x3c] sm:$0xf]
        %v313 = vld [vmem:[#allocation5] sm:$0xf]
        %v314 = vld [vmem:[#allocation5 + $0x4] sm:$0xf]
        %v315 = vld [vmem:[#allocation5 + $0x8] sm:$0xf]
        %v316 = vld [vmem:[#allocation5 + $0xc] sm:$0xf]
        %v317 = vld [vmem:[#allocation5 + $0x10] sm:$0xf]
        %v318 = vld [vmem:[#allocation5 + $0x14] sm:$0xf]
        %v319 = vld [vmem:[#allocation5 + $0x18] sm:$0xf]
        %v320 = vld [vmem:[#allocation5 + $0x1c] sm:$0xf]
        %v321 = vld [vmem:[#allocation5 + $0x20] sm:$0xf]
        %v322 = vld [vmem:[#allocation5 + $0x24] sm:$0xf]
        %v323 = vld [vmem:[#allocation5 + $0x28] sm:$0xf]
        %v324 = vld [vmem:[#allocation5 + $0x2c] sm:$0xf]
        %v325 = vld [vmem:[#allocation5 + $0x30] sm:$0xf]
        %v326 = vld [vmem:[#allocation5 + $0x34] sm:$0xf]
        %v327 = vld [vmem:[#allocation5 + $0x38] sm:$0xf]
        %v328 = vld [vmem:[#allocation5 + $0x3c] sm:$0xf]
        %v329 = vld [vmem:[%s3] sm:$0xf]
        %v334 = vcombine.low %v293, %v294
        %v335 = vcombine.low %v295, %v296
        %vm336 = vcmask 261120
        %v337 = vsel %vm336, %v334, 0
        %v339 = vsel %vm336, %v335, 0
        %341 = vmatprep.subr.mxu0 0.0
        %342 = vmatpush1.msra.mxu0 0.0
        %343 = vmatprep.subr.mxu0 0.0
        %344 = vmatpush1.msra.mxu0 0.0
        %345 = vmatprep.subr.mxu0 0.0
        %346 = vmatpush1.msra.mxu0 0.0
        %347 = vmatprep.subr.mxu0 0.0
        %348 = vmatpush1.msra.mxu0 0.0
        %349 = vmatprep.subr.mxu0 0.0
        %350 = vmatpush1.msra.mxu0 0.0
        %351 = vmatprep.subr.mxu0 0.0
        %352 = vmatpush1.msra.mxu0 0.0
        %353 = vmatprep.subr.mxu0 0.0
        %354 = vmatpush1.msra.mxu0 0.0
        %355 = vmatprep.subr.mxu0 0.0
        %356 = vmatpush1.msra.mxu0 0.0
        %357 = vmatprep.subr.mxu0 0.0
        %358 = vmatpush1.msra.mxu0 0.0
        %359 = vmatprep.subr.mxu0 0.0
        %360 = vmatpush1.msra.mxu0 0.0
        %361 = vmatprep.subr.mxu0 0.0
        %362 = vmatpush1.msra.mxu0 0.0
        %363 = vmatprep.subr.mxu0 0.0
        %364 = vmatpush1.msra.mxu0 0.0
        %365 = vmatprep.subr.mxu0 0.0
        %366 = vmatpush1.msra.mxu0 %v285
        %367 = vmatprep.subr.mxu0 0.0
        %368 = vmatpush1.msra.mxu0 %v284
        %369 = vmatprep.subr.mxu0 0.0
        %370 = vmatpush1.msra.mxu0 %v283
        %371 = vmatprep.subr.mxu0 0.0
        %372 = vmatpush1.msra.mxu0 %v282
        %373 = vmatprep.subr.mxu0 0.0
        %374 = vmatpush2.msra.mxu0 0.0
        %375 = vmatprep.subr.mxu0 0.0
        %376 = vmatpush2.msra.mxu0 0.0
        %377 = vmatprep.subr.mxu0 0.0
        %378 = vmatpush2.msra.mxu0 0.0
        %379 = vmatprep.subr.mxu0 0.0
        %380 = vmatpush2.msra.mxu0 0.0
        %381 = vmatprep.subr.mxu0 0.0
        %382 = vmatpush2.msra.mxu0 0.0
        %383 = vmatprep.subr.mxu0 0.0
        %384 = vmatpush2.msra.mxu0 0.0
        %385 = vmatprep.subr.mxu0 0.0
        %386 = vmatpush2.msra.mxu0 0.0
        %387 = vmatprep.subr.mxu0 0.0
        %388 = vmatpush2.msra.mxu0 0.0
        %389 = vmatprep.subr.mxu0 0.0
        %390 = vmatpush2.msra.mxu0 0.0
        %391 = vmatprep.subr.mxu0 0.0
        %392 = vmatpush2.msra.mxu0 0.0
        %393 = vmatprep.subr.mxu0 0.0
        %394 = vmatpush2.msra.mxu0 0.0
        %395 = vmatprep.subr.mxu0 0.0
        %396 = vmatpush2.msra.mxu0 0.0
        %397 = vmatprep.subr.mxu0 0.0
        %398 = vmatpush2.msra.mxu0 0.0
        %399 = vmatprep.subr.mxu0 0.0
        %400 = vmatpush2.msra.mxu0 0.0
        %401 = vmatprep.subr.mxu0 0.0
        %402 = vmatpush2.msra.mxu0 0.0
        %403 = vmatprep.subr.mxu0 0.0
        %404 = vmatpush2.msra.mxu0 0.0
        %405 = vmatprep.mubr.f32.mxu0 0.0
        %406 = vmatmul.mubr.f32.gmra.mxu0 %v337
        %v407 = vpop.f32.mrf.mxu0
        %v408 = vadd.f32 0.0, %v407
        %v409 = vpop.f32.mrf.mxu0
        %410 = vmatprep.mubr.f32.mxu0 0.0
        %411 = vmatmul.mubr.f32.gmra.mxu0 %v339
        %v412 = vpop.f32.mrf.mxu0
        %v413 = vadd.f32 0.0, %v412
        %v414 = vpop.f32.mrf.mxu0
        %415 = vdwg.mxu0
        %v418 = vcombine.high %v408, %v408
        %v419 = vcombine.high %v413, %v413
        %v438 = vcombine.low %v313, %v314
        %v439 = vcombine.low %v315, %v316
        %v440 = vcombine.low %v317, %v318
        %v441 = vcombine.low %v319, %v320
        %v442 = vcombine.low %v321, %v322
        %v443 = vcombine.low %v323, %v324
        %v444 = vcombine.low %v325, %v326
        %v445 = vcombine.low %v327, %v328
        %vm446 = vcmask 392192
        %v447 = vsel %vm446, %v438, 0
        %v449 = vsel %vm446, %v439, 0
        %v451 = vsel %vm446, %v440, 0
        %v453 = vsel %vm446, %v441, 0
        %v455 = vsel %vm446, %v442, 0
        %v457 = vsel %vm446, %v443, 0
        %v459 = vsel %vm446, %v444, 0
        %v461 = vsel %vm446, %v445, 0
        %463 = vmatprep.subr.mxu0 0.0
        %464 = vmatpush1.msra.mxu0 0.0
        %465 = vmatprep.subr.mxu0 0.0
        %466 = vmatpush1.msra.mxu0 0.0
        %467 = vmatprep.subr.mxu0 0.0
        %468 = vmatpush1.msra.mxu0 0.0
        %469 = vmatprep.subr.mxu0 0.0
        %470 = vmatpush1.msra.mxu0 0.0
        %471 = vmatprep.subr.mxu0 0.0
        %472 = vmatpush1.msra.mxu0 0.0
        %473 = vmatprep.subr.mxu0 0.0
        %474 = vmatpush1.msra.mxu0 0.0
        %475 = vmatprep.subr.mxu0 0.0
        %476 = vmatpush1.msra.mxu0 0.0
        %477 = vmatprep.subr.mxu0 0.0
        %478 = vmatpush1.msra.mxu0 0.0
        %479 = vmatprep.subr.mxu0 0.0
        %480 = vmatpush1.msra.mxu0 0.0
        %481 = vmatprep.subr.mxu0 0.0
        %482 = vmatpush1.msra.mxu0 0.0
        %483 = vmatprep.subr.mxu0 0.0
        %484 = vmatpush1.msra.mxu0 %v291
        %485 = vmatprep.subr.mxu0 0.0
        %486 = vmatpush1.msra.mxu0 %v290
        %487 = vmatprep.subr.mxu0 0.0
        %488 = vmatpush1.msra.mxu0 %v289
        %489 = vmatprep.subr.mxu0 0.0
        %490 = vmatpush1.msra.mxu0 %v288
        %491 = vmatprep.subr.mxu0 0.0
        %492 = vmatpush1.msra.mxu0 %v287
        %493 = vmatprep.subr.mxu0 0.0
        %494 = vmatpush1.msra.mxu0 %v286
        %495 = vmatprep.subr.mxu0 0.0
        %496 = vmatpush2.msra.mxu0 0.0
        %497 = vmatprep.subr.mxu0 0.0
        %498 = vmatpush2.msra.mxu0 0.0
        %499 = vmatprep.subr.mxu0 0.0
        %500 = vmatpush2.msra.mxu0 0.0
        %501 = vmatprep.subr.mxu0 0.0
        %502 = vmatpush2.msra.mxu0 0.0
        %503 = vmatprep.subr.mxu0 0.0
        %504 = vmatpush2.msra.mxu0 0.0
        %505 = vmatprep.subr.mxu0 0.0
        %506 = vmatpush2.msra.mxu0 0.0
        %507 = vmatprep.subr.mxu0 0.0
        %508 = vmatpush2.msra.mxu0 0.0
        %509 = vmatprep.subr.mxu0 0.0
        %510 = vmatpush2.msra.mxu0 0.0
        %511 = vmatprep.subr.mxu0 0.0
        %512 = vmatpush2.msra.mxu0 0.0
        %513 = vmatprep.subr.mxu0 0.0
        %514 = vmatpush2.msra.mxu0 0.0
        %515 = vmatprep.subr.mxu0 0.0
        %516 = vmatpush2.msra.mxu0 0.0
        %517 = vmatprep.subr.mxu0 0.0
        %518 = vmatpush2.msra.mxu0 0.0
        %519 = vmatprep.subr.mxu0 0.0
        %520 = vmatpush2.msra.mxu0 0.0
        %521 = vmatprep.subr.mxu0 0.0
        %522 = vmatpush2.msra.mxu0 0.0
        %523 = vmatprep.subr.mxu0 0.0
        %524 = vmatpush2.msra.mxu0 0.0
        %525 = vmatprep.subr.mxu0 0.0
        %526 = vmatpush2.msra.mxu0 0.0
        %527 = vmatprep.mubr.f32.mxu0 0.0
        %528 = vmatmul.mubr.f32.gmra.mxu0 %v447
        %v529 = vpop.f32.mrf.mxu0
        %v530 = vadd.f32 0.0, %v529
        %v531 = vpop.f32.mrf.mxu0
        %532 = vmatprep.mubr.f32.mxu0 0.0
        %533 = vmatmul.mubr.f32.gmra.mxu0 %v449
        %v534 = vpop.f32.mrf.mxu0
        %v535 = vadd.f32 0.0, %v534
        %v536 = vpop.f32.mrf.mxu0
        %537 = vmatprep.mubr.f32.mxu0 0.0
        %538 = vmatmul.mubr.f32.gmra.mxu0 %v451
        %v539 = vpop.f32.mrf.mxu0
        %v540 = vadd.f32 0.0, %v539
        %v541 = vpop.f32.mrf.mxu0
        %542 = vmatprep.mubr.f32.mxu0 0.0
        %543 = vmatmul.mubr.f32.gmra.mxu0 %v453
        %v544 = vpop.f32.mrf.mxu0
        %v545 = vadd.f32 0.0, %v544
        %v546 = vpop.f32.mrf.mxu0
        %547 = vmatprep.mubr.f32.mxu0 0.0
        %548 = vmatmul.mubr.f32.gmra.mxu0 %v455
        %v549 = vpop.f32.mrf.mxu0
        %v550 = vadd.f32 0.0, %v549
        %v551 = vpop.f32.mrf.mxu0
        %552 = vmatprep.mubr.f32.mxu0 0.0
        %553 = vmatmul.mubr.f32.gmra.mxu0 %v457
        %v554 = vpop.f32.mrf.mxu0
        %v555 = vadd.f32 0.0, %v554
        %v556 = vpop.f32.mrf.mxu0
        %557 = vmatprep.mubr.f32.mxu0 0.0
        %558 = vmatmul.mubr.f32.gmra.mxu0 %v459
        %v559 = vpop.f32.mrf.mxu0
        %v560 = vadd.f32 0.0, %v559
        %v561 = vpop.f32.mrf.mxu0
        %562 = vmatprep.mubr.f32.mxu0 0.0
        %563 = vmatmul.mubr.f32.gmra.mxu0 %v461
        %v564 = vpop.f32.mrf.mxu0
        %v565 = vadd.f32 0.0, %v564
        %v566 = vpop.f32.mrf.mxu0
        %567 = vdwg.mxu0
        %v576 = vcombine.high %v530, %v530
        %v577 = vcombine.high %v535, %v535
        %v578 = vcombine.high %v540, %v540
        %v579 = vcombine.high %v545, %v545
        %v580 = vcombine.high %v550, %v550
        %v581 = vcombine.high %v555, %v555
        %v582 = vcombine.high %v560, %v560
        %v583 = vcombine.high %v565, %v565
        %v584 = vlaneseq
        %v585 = vshrl.u32 %v584, 7
        %v586 = vsub.s32 0, %v585
        %v587 = vrot.slane %v292, %v586
        %589 = vbcast.lane.b32.xlu0 %v587, 256
        %v590 = vpop.permute.xlu0 %589
        %s592 = sor.u32 256, 8
        %593 = vbcast.lane.b32.xlu0 %v587, %s592
        %v594 = vpop.permute.xlu0 %593
        %s596 = sor.u32 256, 16
        %597 = vbcast.lane.b32.xlu0 %v587, %s596
        %v598 = vpop.permute.xlu0 %597
        %s600 = sor.u32 256, 24
        %601 = vbcast.lane.b32.xlu0 %v587, %s600
        %v602 = vpop.permute.xlu0 %601
        %v603 = vlaneseq
        %v604 = vshrl.u32 %v603, 7
        %v605 = vsub.s32 0, %v604
        %v606 = vrot.slane %v530, %v605
        %v607 = vlaneseq
        %v608 = vshrl.u32 %v607, 7
        %v609 = vsub.s32 0, %v608
        %v610 = vrot.slane %v576, %v609
        %v611 = vlaneseq
        %v612 = vshrl.u32 %v611, 7
        %v613 = vsub.s32 0, %v612
        %v614 = vrot.slane %v535, %v613
        %v615 = vlaneseq
        %v616 = vshrl.u32 %v615, 7
        %v617 = vsub.s32 0, %v616
        %v618 = vrot.slane %v577, %v617
        %v619 = vlaneseq
        %v620 = vshrl.u32 %v619, 7
        %v621 = vsub.s32 0, %v620
        %v622 = vrot.slane %v540, %v621
        %v623 = vlaneseq
        %v624 = vshrl.u32 %v623, 7
        %v625 = vsub.s32 0, %v624
        %v626 = vrot.slane %v578, %v625
        %v627 = vlaneseq
        %v628 = vshrl.u32 %v627, 7
        %v629 = vsub.s32 0, %v628
        %v630 = vrot.slane %v545, %v629
        %v631 = vlaneseq
        %v632 = vshrl.u32 %v631, 7
        %v633 = vsub.s32 0, %v632
        %v634 = vrot.slane %v579, %v633
        %v635 = vlaneseq
        %v636 = vshrl.u32 %v635, 7
        %v637 = vsub.s32 0, %v636
        %v638 = vrot.slane %v550, %v637
        %v639 = vlaneseq
        %v640 = vshrl.u32 %v639, 7
        %v641 = vsub.s32 0, %v640
        %v642 = vrot.slane %v580, %v641
        %v643 = vlaneseq
        %v644 = vshrl.u32 %v643, 7
        %v645 = vsub.s32 0, %v644
        %v646 = vrot.slane %v555, %v645
        %v647 = vlaneseq
        %v648 = vshrl.u32 %v647, 7
        %v649 = vsub.s32 0, %v648
        %v650 = vrot.slane %v581, %v649
        %v651 = vlaneseq
        %v652 = vshrl.u32 %v651, 7
        %v653 = vsub.s32 0, %v652
        %v654 = vrot.slane %v560, %v653
        %v655 = vlaneseq
        %v656 = vshrl.u32 %v655, 7
        %v657 = vsub.s32 0, %v656
        %v658 = vrot.slane %v582, %v657
        %v659 = vlaneseq
        %v660 = vshrl.u32 %v659, 7
        %v661 = vsub.s32 0, %v660
        %v662 = vrot.slane %v565, %v661
        %v663 = vlaneseq
        %v664 = vshrl.u32 %v663, 7
        %v665 = vsub.s32 0, %v664
        %v666 = vrot.slane %v583, %v665
        %vm667 = vcmask 1041409
        %v668 = vsel %vm667, %v610, %v606
        %vm669 = vcmask 1042434
        %v670 = vsel %vm669, %v614, %v668
        %vm671 = vcmask 1043459
        %v672 = vsel %vm671, %v618, %v670
        %vm673 = vcmask 1044484
        %v674 = vsel %vm673, %v622, %v672
        %vm675 = vcmask 1045509
        %v676 = vsel %vm675, %v626, %v674
        %vm677 = vcmask 1046534
        %v678 = vsel %vm677, %v630, %v676
        %vm679 = vcmask 1047559
        %v680 = vsel %vm679, %v634, %v678
        %v681 = vsel %vm667, %v642, %v638
        %v682 = vsel %vm669, %v646, %v681
        %v683 = vsel %vm671, %v650, %v682
        %v684 = vsel %vm673, %v654, %v683
        %v685 = vsel %vm675, %v658, %v684
        %v686 = vsel %vm677, %v662, %v685
        %v687 = vsel %vm679, %v666, %v686
        %690 = vxpose.xlu0.b32.start [1/16] %v680, 128
        %691 = vxpose.xlu0.b32.cont [2/16] %v687, 128
        %692 = vxpose.xlu0.b32.cont [3/16] 0.0, 128
        %693 = vxpose.xlu0.b32.cont [4/16] 0.0, 128
        %694 = vxpose.xlu0.b32.cont [5/16] 0.0, 128
        %695 = vxpose.xlu0.b32.cont [6/16] 0.0, 128
        %696 = vxpose.xlu0.b32.cont [7/16] 0.0, 128
        %697 = vxpose.xlu0.b32.cont [8/16] 0.0, 128
        %698 = vxpose.xlu0.b32.cont [9/16] 0.0, 128
        %699 = vxpose.xlu0.b32.cont [10/16] 0.0, 128
        %700 = vxpose.xlu0.b32.cont [11/16] 0.0, 128
        %701 = vxpose.xlu0.b32.cont [12/16] 0.0, 128
        %702 = vxpose.xlu0.b32.cont [13/16] 0.0, 128
        %703 = vxpose.xlu0.b32.cont [14/16] 0.0, 128
        %704 = vxpose.xlu0.b32.cont [15/16] 0.0, 128
        %705 = vxpose.xlu0.b32.end [16/16] 0.0, 128
        %v706 = vpop.trf.xlu0
        %v707 = vpop.trf.xlu0
        %v708 = vpop.trf.xlu0
        %v709 = vpop.trf.xlu0
        %v710 = vpop.trf.xlu0
        %v711 = vpop.trf.xlu0
        %v712 = vpop.trf.xlu0
        %v713 = vpop.trf.xlu0
        %v714 = vpop.trf.xlu0
        %v715 = vpop.trf.xlu0
        %v716 = vpop.trf.xlu0
        %v717 = vpop.trf.xlu0
        %v718 = vpop.trf.xlu0
        %v719 = vpop.trf.xlu0
        %v720 = vpop.trf.xlu0
        %v721 = vpop.trf.xlu0
        %v722 = vlaneseq
        %v723 = vshrl.u32 %v722, 7
        %v724 = vsub.s32 0, %v723
        %v725 = vrot.slane %v408, %v724
        %727 = vbcast.lane.b32.xlu0 %v725, 256
        %v728 = vpop.permute.xlu0 %727
        %s730 = sor.u32 256, 8
        %731 = vbcast.lane.b32.xlu0 %v725, %s730
        %v732 = vpop.permute.xlu0 %731
        %s734 = sor.u32 256, 16
        %735 = vbcast.lane.b32.xlu0 %v725, %s734
        %v736 = vpop.permute.xlu0 %735
        %s738 = sor.u32 256, 24
        %739 = vbcast.lane.b32.xlu0 %v725, %s738
        %v740 = vpop.permute.xlu0 %739
        %v741 = vlaneseq
        %v742 = vshrl.u32 %v741, 7
        %v743 = vsub.s32 0, %v742
        %v744 = vrot.slane %v418, %v743
        %746 = vbcast.lane.b32.xlu0 %v744, 256
        %v747 = vpop.permute.xlu0 %746
        %s749 = sor.u32 256, 8
        %750 = vbcast.lane.b32.xlu0 %v744, %s749
        %v751 = vpop.permute.xlu0 %750
        %s753 = sor.u32 256, 16
        %754 = vbcast.lane.b32.xlu0 %v744, %s753
        %v755 = vpop.permute.xlu0 %754
        %s757 = sor.u32 256, 24
        %758 = vbcast.lane.b32.xlu0 %v744, %s757
        %v759 = vpop.permute.xlu0 %758
        %v760 = vlaneseq
        %v761 = vshrl.u32 %v760, 7
        %v762 = vsub.s32 0, %v761
        %v763 = vrot.slane %v413, %v762
        %765 = vbcast.lane.b32.xlu0 %v763, 256
        %v766 = vpop.permute.xlu0 %765
        %s768 = sor.u32 256, 8
        %769 = vbcast.lane.b32.xlu0 %v763, %s768
        %v770 = vpop.permute.xlu0 %769
        %s772 = sor.u32 256, 16
        %773 = vbcast.lane.b32.xlu0 %v763, %s772
        %v774 = vpop.permute.xlu0 %773
        %s776 = sor.u32 256, 24
        %777 = vbcast.lane.b32.xlu0 %v763, %s776
        %v778 = vpop.permute.xlu0 %777
        %v779 = vlaneseq
        %v780 = vshrl.u32 %v779, 7
        %v781 = vsub.s32 0, %v780
        %v782 = vrot.slane %v419, %v781
        %784 = vbcast.lane.b32.xlu0 %v782, 256
        %v785 = vpop.permute.xlu0 %784
        %s787 = sor.u32 256, 8
        %788 = vbcast.lane.b32.xlu0 %v782, %s787
        %v789 = vpop.permute.xlu0 %788
        %s791 = sor.u32 256, 16
        %792 = vbcast.lane.b32.xlu0 %v782, %s791
        %v793 = vpop.permute.xlu0 %792
        %s795 = sor.u32 256, 24
        %796 = vbcast.lane.b32.xlu0 %v782, %s795
        %v797 = vpop.permute.xlu0 %796
        %v798 = vadd.f32 %v728, %v706
        %v799 = vadd.f32 %v732, %v707
        %v800 = vadd.f32 %v736, %v708
        %v801 = vadd.f32 %v740, %v709
        %v802 = vadd.f32 %v747, %v706
        %v803 = vadd.f32 %v751, %v707
        %v804 = vadd.f32 %v755, %v708
        %v805 = vadd.f32 %v759, %v709
        %v806 = vadd.f32 %v766, %v706
        %v807 = vadd.f32 %v770, %v707
        %v808 = vadd.f32 %v774, %v708
        %v809 = vadd.f32 %v778, %v709
        %v810 = vadd.f32 %v785, %v706
        %v811 = vadd.f32 %v789, %v707
        %v812 = vadd.f32 %v793, %v708
        %v813 = vadd.f32 %v797, %v709
        %v814 = vtanh.pop %v798
        %v815 = vtanh.pop %v799
        %v816 = vtanh.pop %v800
        %v817 = vtanh.pop %v801
        %v818 = vtanh.pop %v802
        %v819 = vtanh.pop %v803
        %v820 = vtanh.pop %v804
        %v821 = vtanh.pop %v805
        %v822 = vtanh.pop %v806
        %v823 = vtanh.pop %v807
        %v824 = vtanh.pop %v808
        %v825 = vtanh.pop %v809
        %v826 = vtanh.pop %v810
        %v827 = vtanh.pop %v811
        %v828 = vtanh.pop %v812
        %v829 = vtanh.pop %v813
        %v830 = vmul.f32 %v814, %v590
        %v831 = vmul.f32 %v815, %v594
        %v832 = vmul.f32 %v816, %v598
        %v833 = vmul.f32 %v817, %v602
        %v834 = vmul.f32 %v818, %v590
        %v835 = vmul.f32 %v819, %v594
        %v836 = vmul.f32 %v820, %v598
        %v837 = vmul.f32 %v821, %v602
        %v838 = vmul.f32 %v822, %v590
        %v839 = vmul.f32 %v823, %v594
        %v840 = vmul.f32 %v824, %v598
        %v841 = vmul.f32 %v825, %v602
        %v842 = vmul.f32 %v826, %v590
        %v843 = vmul.f32 %v827, %v594
        %v844 = vmul.f32 %v828, %v598
        %v845 = vmul.f32 %v829, %v602
        %vm846 = vcmask 130048
        %v847 = vsel %vm846, %v830, 0.0
        %v848 = vsel %vm846, %v831, 0.0
        %v849 = vadd.f32 %v847, %v848
        %v850 = vsel %vm846, %v832, 0.0
        %v851 = vadd.f32 %v849, %v850
        %v852 = vsel %vm846, %v833, 0.0
        %v853 = vadd.f32 %v851, %v852
        %v854 = vrot.slane %v853, 4
        %v855 = vadd.f32 %v853, %v854
        %v856 = vrot.slane %v855, 2
        %v857 = vadd.f32 %v855, %v856
        %v858 = vrot.slane %v857, 1
        %v859 = vadd.f32 %v857, %v858
        %v860 = vsel %vm846, %v834, 0.0
        %v861 = vsel %vm846, %v835, 0.0
        %v862 = vadd.f32 %v860, %v861
        %v863 = vsel %vm846, %v836, 0.0
        %v864 = vadd.f32 %v862, %v863
        %v865 = vsel %vm846, %v837, 0.0
        %v866 = vadd.f32 %v864, %v865
        %v867 = vrot.slane %v866, 4
        %v868 = vadd.f32 %v866, %v867
        %v869 = vrot.slane %v868, 2
        %v870 = vadd.f32 %v868, %v869
        %v871 = vrot.slane %v870, 1
        %v872 = vadd.f32 %v870, %v871
        %v873 = vsel %vm846, %v838, 0.0
        %v874 = vsel %vm846, %v839, 0.0
        %v875 = vadd.f32 %v873, %v874
        %v876 = vsel %vm846, %v840, 0.0
        %v877 = vadd.f32 %v875, %v876
        %v878 = vsel %vm846, %v841, 0.0
        %v879 = vadd.f32 %v877, %v878
        %v880 = vrot.slane %v879, 4
        %v881 = vadd.f32 %v879, %v880
        %v882 = vrot.slane %v881, 2
        %v883 = vadd.f32 %v881, %v882
        %v884 = vrot.slane %v883, 1
        %v885 = vadd.f32 %v883, %v884
        %v886 = vsel %vm846, %v842, 0.0
        %v887 = vsel %vm846, %v843, 0.0
        %v888 = vadd.f32 %v886, %v887
        %v889 = vsel %vm846, %v844, 0.0
        %v890 = vadd.f32 %v888, %v889
        %v891 = vsel %vm846, %v845, 0.0
        %v892 = vadd.f32 %v890, %v891
        %v893 = vrot.slane %v892, 4
        %v894 = vadd.f32 %v892, %v893
        %v895 = vrot.slane %v894, 2
        %v896 = vadd.f32 %v894, %v895
        %v897 = vrot.slane %v896, 1
        %v898 = vadd.f32 %v896, %v897
        %vm899 = vcmp.gt.f32.partialorder %v329, 0.0
        %v900 = vsel %vm899, 1, 0
        %v901 = vlaneseq
        %v902 = vshrl.u32 %v901, 7
        %v903 = vsub.s32 0, %v902
        %v904 = vrot.slane %v900, %v903
        %vm905 = vcmp.eq.s32.totalorder %v904, 1
        %v910 = vsel %vm667, %v872, %v859
        %v911 = vsel %vm669, %v885, %v910
        %v912 = vsel %vm671, %v898, %v911
        %v914 = vsel %vm905, %v912, -1e+30
        %vm915 = vcmask 125952
        %v916 = vsel %vm915, %v914, -inf
        %917 = vmax.xlane.f32.xlu0 %v916
        %v918 = vpop.xlane.xlu0 %917
        %v919 = vsub.f32 %v914, %v918
        %v920 = vmul.f32 %v919, 1.442695
        %v921 = vpow.pop %v920
        %v922 = vsel %vm915, %v921, 0.0
        %923 = vadd.xlane.f32.xlu0 %v922
        %v924 = vpop.xlane.xlu0 %923
        %v925 = vrcp.pop %v924
        %v926 = vmul.f32 1.0, %v925
        %v927 = vmul.f32 %v921, %v926
        %v944 = vrot.slane %v298, 7
        %v945 = vsel %vm667, %v944, %v297
        %v946 = vrot.slane %v299, 6
        %v947 = vsel %vm669, %v946, %v945
        %v948 = vrot.slane %v300, 5
        %v949 = vsel %vm671, %v948, %v947
        %v950 = vrot.slane %v301, 4
        %v951 = vsel %vm673, %v950, %v949
        %v952 = vrot.slane %v302, 3
        %v953 = vsel %vm675, %v952, %v951
        %v954 = vrot.slane %v303, 2
        %v955 = vsel %vm677, %v954, %v953
        %v956 = vrot.slane %v304, 1
        %v957 = vsel %vm679, %v956, %v955
        %v958 = vrot.slane %v306, 7
        %v959 = vsel %vm667, %v958, %v305
        %v960 = vrot.slane %v307, 6
        %v961 = vsel %vm669, %v960, %v959
        %v962 = vrot.slane %v308, 5
        %v963 = vsel %vm671, %v962, %v961
        %v964 = vrot.slane %v309, 4
        %v965 = vsel %vm673, %v964, %v963
        %v966 = vrot.slane %v310, 3
        %v967 = vsel %vm675, %v966, %v965
        %v968 = vrot.slane %v311, 2
        %v969 = vsel %vm677, %v968, %v967
        %v970 = vrot.slane %v312, 1
        %v971 = vsel %vm679, %v970, %v969
        %v975 = vsel %vm846, %v927, 0
        %977 = vmatprep.subr.mxu0 0.0
        %978 = vmatpush1.msra.mxu0 0.0
        %979 = vmatprep.subr.mxu0 0.0
        %980 = vmatpush1.msra.mxu0 0.0
        %981 = vmatprep.subr.mxu0 0.0
        %982 = vmatpush1.msra.mxu0 0.0
        %983 = vmatprep.subr.mxu0 0.0
        %984 = vmatpush1.msra.mxu0 0.0
        %985 = vmatprep.subr.mxu0 0.0
        %986 = vmatpush1.msra.mxu0 0.0
        %987 = vmatprep.subr.mxu0 0.0
        %988 = vmatpush1.msra.mxu0 0.0
        %989 = vmatprep.subr.mxu0 0.0
        %990 = vmatpush1.msra.mxu0 0.0
        %991 = vmatprep.subr.mxu0 0.0
        %992 = vmatpush1.msra.mxu0 0.0
        %993 = vmatprep.subr.mxu0 0.0
        %994 = vmatpush1.msra.mxu0 0.0
        %995 = vmatprep.subr.mxu0 0.0
        %996 = vmatpush1.msra.mxu0 0.0
        %997 = vmatprep.subr.mxu0 0.0
        %998 = vmatpush1.msra.mxu0 0.0
        %999 = vmatprep.subr.mxu0 0.0
        %1000 = vmatpush1.msra.mxu0 0.0
        %1001 = vmatprep.subr.mxu0 0.0
        %1002 = vmatpush1.msra.mxu0 0.0
        %1003 = vmatprep.subr.mxu0 0.0
        %1004 = vmatpush1.msra.mxu0 0.0
        %1005 = vmatprep.subr.mxu0 0.0
        %1006 = vmatpush1.msra.mxu0 %v971
        %1007 = vmatprep.subr.mxu0 0.0
        %1008 = vmatpush1.msra.mxu0 %v957
        %1009 = vmatprep.subr.mxu0 0.0
        %1010 = vmatpush2.msra.mxu0 0.0
        %1011 = vmatprep.subr.mxu0 0.0
        %1012 = vmatpush2.msra.mxu0 0.0
        %1013 = vmatprep.subr.mxu0 0.0
        %1014 = vmatpush2.msra.mxu0 0.0
        %1015 = vmatprep.subr.mxu0 0.0
        %1016 = vmatpush2.msra.mxu0 0.0
        %1017 = vmatprep.subr.mxu0 0.0
        %1018 = vmatpush2.msra.mxu0 0.0
        %1019 = vmatprep.subr.mxu0 0.0
        %1020 = vmatpush2.msra.mxu0 0.0
        %1021 = vmatprep.subr.mxu0 0.0
        %1022 = vmatpush2.msra.mxu0 0.0
        %1023 = vmatprep.subr.mxu0 0.0
        %1024 = vmatpush2.msra.mxu0 0.0
        %1025 = vmatprep.subr.mxu0 0.0
        %1026 = vmatpush2.msra.mxu0 0.0
        %1027 = vmatprep.subr.mxu0 0.0
        %1028 = vmatpush2.msra.mxu0 0.0
        %1029 = vmatprep.subr.mxu0 0.0
        %1030 = vmatpush2.msra.mxu0 0.0
        %1031 = vmatprep.subr.mxu0 0.0
        %1032 = vmatpush2.msra.mxu0 0.0
        %1033 = vmatprep.subr.mxu0 0.0
        %1034 = vmatpush2.msra.mxu0 0.0
        %1035 = vmatprep.subr.mxu0 0.0
        %1036 = vmatpush2.msra.mxu0 0.0
        %1037 = vmatprep.subr.mxu0 0.0
        %1038 = vmatpush2.msra.mxu0 0.0
        %1039 = vmatprep.subr.mxu0 0.0
        %1040 = vmatpush2.msra.mxu0 0.0
        %1041 = vmatprep.mubr.f32.mxu0 0.0
        %1042 = vmatmul.mubr.f32.gmra.mxu0 %v975
        %v1043 = vpop.f32.mrf.mxu0
        %v1044 = vadd.f32 0.0, %v1043
        %v1045 = vpop.f32.mrf.mxu0
        %1046 = vdwg.mxu0
        %v1047 = vlaneseq
        %v1048 = vshrl.u32 %v1047, 7
        %v1049 = vsub.s32 1, %v1048
        %v1050 = vrot.slane %v530, %v1049
        %v1051 = vlaneseq
        %v1052 = vshrl.u32 %v1051, 7
        %v1053 = vsub.s32 1, %v1052
        %v1054 = vrot.slane %v576, %v1053
        %v1055 = vlaneseq
        %v1056 = vshrl.u32 %v1055, 7
        %v1057 = vsub.s32 1, %v1056
        %v1058 = vrot.slane %v535, %v1057
        %v1059 = vlaneseq
        %v1060 = vshrl.u32 %v1059, 7
        %v1061 = vsub.s32 1, %v1060
        %v1062 = vrot.slane %v577, %v1061
        %v1063 = vlaneseq
        %v1064 = vshrl.u32 %v1063, 7
        %v1065 = vsub.s32 1, %v1064
        %v1066 = vrot.slane %v540, %v1065
        %v1067 = vlaneseq
        %v1068 = vshrl.u32 %v1067, 7
        %v1069 = vsub.s32 1, %v1068
        %v1070 = vrot.slane %v578, %v1069
        %v1071 = vlaneseq
        %v1072 = vshrl.u32 %v1071, 7
        %v1073 = vsub.s32 1, %v1072
        %v1074 = vrot.slane %v545, %v1073
        %v1075 = vlaneseq
        %v1076 = vshrl.u32 %v1075, 7
        %v1077 = vsub.s32 1, %v1076
        %v1078 = vrot.slane %v579, %v1077
        %v1079 = vlaneseq
        %v1080 = vshrl.u32 %v1079, 7
        %v1081 = vsub.s32 1, %v1080
        %v1082 = vrot.slane %v550, %v1081
        %v1083 = vlaneseq
        %v1084 = vshrl.u32 %v1083, 7
        %v1085 = vsub.s32 1, %v1084
        %v1086 = vrot.slane %v580, %v1085
        %v1087 = vlaneseq
        %v1088 = vshrl.u32 %v1087, 7
        %v1089 = vsub.s32 1, %v1088
        %v1090 = vrot.slane %v555, %v1089
        %v1091 = vlaneseq
        %v1092 = vshrl.u32 %v1091, 7
        %v1093 = vsub.s32 1, %v1092
        %v1094 = vrot.slane %v581, %v1093
        %v1095 = vlaneseq
        %v1096 = vshrl.u32 %v1095, 7
        %v1097 = vsub.s32 1, %v1096
        %v1098 = vrot.slane %v560, %v1097
        %v1099 = vlaneseq
        %v1100 = vshrl.u32 %v1099, 7
        %v1101 = vsub.s32 1, %v1100
        %v1102 = vrot.slane %v582, %v1101
        %v1103 = vlaneseq
        %v1104 = vshrl.u32 %v1103, 7
        %v1105 = vsub.s32 1, %v1104
        %v1106 = vrot.slane %v565, %v1105
        %v1107 = vlaneseq
        %v1108 = vshrl.u32 %v1107, 7
        %v1109 = vsub.s32 1, %v1108
        %v1110 = vrot.slane %v583, %v1109
        %v1111 = vsel %vm667, %v1054, %v1050
        %v1112 = vsel %vm669, %v1058, %v1111
        %v1113 = vsel %vm671, %v1062, %v1112
        %v1114 = vsel %vm673, %v1066, %v1113
        %v1115 = vsel %vm675, %v1070, %v1114
        %v1116 = vsel %vm677, %v1074, %v1115
        %v1117 = vsel %vm679, %v1078, %v1116
        %v1118 = vsel %vm667, %v1086, %v1082
        %v1119 = vsel %vm669, %v1090, %v1118
        %v1120 = vsel %vm671, %v1094, %v1119
        %v1121 = vsel %vm673, %v1098, %v1120
        %v1122 = vsel %vm675, %v1102, %v1121
        %v1123 = vsel %vm677, %v1106, %v1122
        %v1124 = vsel %vm679, %v1110, %v1123
        %1127 = vxpose.xlu0.b32.start [1/16] %v1117, 128
        %1128 = vxpose.xlu0.b32.cont [2/16] %v1124, 128
        %1129 = vxpose.xlu0.b32.cont [3/16] 0.0, 128
        %1130 = vxpose.xlu0.b32.cont [4/16] 0.0, 128
        %1131 = vxpose.xlu0.b32.cont [5/16] 0.0, 128
        %1132 = vxpose.xlu0.b32.cont [6/16] 0.0, 128
        %1133 = vxpose.xlu0.b32.cont [7/16] 0.0, 128
        %1134 = vxpose.xlu0.b32.cont [8/16] 0.0, 128
        %1135 = vxpose.xlu0.b32.cont [9/16] 0.0, 128
        %1136 = vxpose.xlu0.b32.cont [10/16] 0.0, 128
        %1137 = vxpose.xlu0.b32.cont [11/16] 0.0, 128
        %1138 = vxpose.xlu0.b32.cont [12/16] 0.0, 128
        %1139 = vxpose.xlu0.b32.cont [13/16] 0.0, 128
        %1140 = vxpose.xlu0.b32.cont [14/16] 0.0, 128
        %1141 = vxpose.xlu0.b32.cont [15/16] 0.0, 128
        %1142 = vxpose.xlu0.b32.end [16/16] 0.0, 128
        %v1143 = vpop.trf.xlu0
        %v1144 = vpop.trf.xlu0
        %v1145 = vpop.trf.xlu0
        %v1146 = vpop.trf.xlu0
        %v1147 = vpop.trf.xlu0
        %v1148 = vpop.trf.xlu0
        %v1149 = vpop.trf.xlu0
        %v1150 = vpop.trf.xlu0
        %v1151 = vpop.trf.xlu0
        %v1152 = vpop.trf.xlu0
        %v1153 = vpop.trf.xlu0
        %v1154 = vpop.trf.xlu0
        %v1155 = vpop.trf.xlu0
        %v1156 = vpop.trf.xlu0
        %v1157 = vpop.trf.xlu0
        %v1158 = vpop.trf.xlu0
        %v1159 = vlaneseq
        %v1160 = vshrl.u32 %v1159, 7
        %v1161 = vsub.s32 1, %v1160
        %v1162 = vrot.slane %v408, %v1161
        %1164 = vbcast.lane.b32.xlu0 %v1162, 256
        %v1165 = vpop.permute.xlu0 %1164
        %s1167 = sor.u32 256, 8
        %1168 = vbcast.lane.b32.xlu0 %v1162, %s1167
        %v1169 = vpop.permute.xlu0 %1168
        %s1171 = sor.u32 256, 16
        %1172 = vbcast.lane.b32.xlu0 %v1162, %s1171
        %v1173 = vpop.permute.xlu0 %1172
        %s1175 = sor.u32 256, 24
        %1176 = vbcast.lane.b32.xlu0 %v1162, %s1175
        %v1177 = vpop.permute.xlu0 %1176
        %v1178 = vlaneseq
        %v1179 = vshrl.u32 %v1178, 7
        %v1180 = vsub.s32 1, %v1179
        %v1181 = vrot.slane %v418, %v1180
        %1183 = vbcast.lane.b32.xlu0 %v1181, 256
        %v1184 = vpop.permute.xlu0 %1183
        %s1186 = sor.u32 256, 8
        %1187 = vbcast.lane.b32.xlu0 %v1181, %s1186
        %v1188 = vpop.permute.xlu0 %1187
        %s1190 = sor.u32 256, 16
        %1191 = vbcast.lane.b32.xlu0 %v1181, %s1190
        %v1192 = vpop.permute.xlu0 %1191
        %s1194 = sor.u32 256, 24
        %1195 = vbcast.lane.b32.xlu0 %v1181, %s1194
        %v1196 = vpop.permute.xlu0 %1195
        %v1197 = vlaneseq
        %v1198 = vshrl.u32 %v1197, 7
        %v1199 = vsub.s32 1, %v1198
        %v1200 = vrot.slane %v413, %v1199
        %1202 = vbcast.lane.b32.xlu0 %v1200, 256
        %v1203 = vpop.permute.xlu0 %1202
        %s1205 = sor.u32 256, 8
        %1206 = vbcast.lane.b32.xlu0 %v1200, %s1205
        %v1207 = vpop.permute.xlu0 %1206
        %s1209 = sor.u32 256, 16
        %1210 = vbcast.lane.b32.xlu0 %v1200, %s1209
        %v1211 = vpop.permute.xlu0 %1210
        %s1213 = sor.u32 256, 24
        %1214 = vbcast.lane.b32.xlu0 %v1200, %s1213
        %v1215 = vpop.permute.xlu0 %1214
        %v1216 = vlaneseq
        %v1217 = vshrl.u32 %v1216, 7
        %v1218 = vsub.s32 1, %v1217
        %v1219 = vrot.slane %v419, %v1218
        %1221 = vbcast.lane.b32.xlu0 %v1219, 256
        %v1222 = vpop.permute.xlu0 %1221
        %s1224 = sor.u32 256, 8
        %1225 = vbcast.lane.b32.xlu0 %v1219, %s1224
        %v1226 = vpop.permute.xlu0 %1225
        %s1228 = sor.u32 256, 16
        %1229 = vbcast.lane.b32.xlu0 %v1219, %s1228
        %v1230 = vpop.permute.xlu0 %1229
        %s1232 = sor.u32 256, 24
        %1233 = vbcast.lane.b32.xlu0 %v1219, %s1232
        %v1234 = vpop.permute.xlu0 %1233
        %v1235 = vadd.f32 %v1165, %v1143
        %v1236 = vadd.f32 %v1169, %v1144
        %v1237 = vadd.f32 %v1173, %v1145
        %v1238 = vadd.f32 %v1177, %v1146
        %v1239 = vadd.f32 %v1184, %v1143
        %v1240 = vadd.f32 %v1188, %v1144
        %v1241 = vadd.f32 %v1192, %v1145
        %v1242 = vadd.f32 %v1196, %v1146
        %v1243 = vadd.f32 %v1203, %v1143
        %v1244 = vadd.f32 %v1207, %v1144
        %v1245 = vadd.f32 %v1211, %v1145
        %v1246 = vadd.f32 %v1215, %v1146
        %v1247 = vadd.f32 %v1222, %v1143
        %v1248 = vadd.f32 %v1226, %v1144
        %v1249 = vadd.f32 %v1230, %v1145
        %v1250 = vadd.f32 %v1234, %v1146
        %v1251 = vtanh.pop %v1235
        %v1252 = vtanh.pop %v1236
        %v1253 = vtanh.pop %v1237
        %v1254 = vtanh.pop %v1238
        %v1255 = vtanh.pop %v1239
        %v1256 = vtanh.pop %v1240
        %v1257 = vtanh.pop %v1241
        %v1258 = vtanh.pop %v1242
        %v1259 = vtanh.pop %v1243
        %v1260 = vtanh.pop %v1244
        %v1261 = vtanh.pop %v1245
        %v1262 = vtanh.pop %v1246
        %v1263 = vtanh.pop %v1247
        %v1264 = vtanh.pop %v1248
        %v1265 = vtanh.pop %v1249
        %v1266 = vtanh.pop %v1250
        %v1267 = vmul.f32 %v1251, %v590
        %v1268 = vmul.f32 %v1252, %v594
        %v1269 = vmul.f32 %v1253, %v598
        %v1270 = vmul.f32 %v1254, %v602
        %v1271 = vmul.f32 %v1255, %v590
        %v1272 = vmul.f32 %v1256, %v594
        %v1273 = vmul.f32 %v1257, %v598
        %v1274 = vmul.f32 %v1258, %v602
        %v1275 = vmul.f32 %v1259, %v590
        %v1276 = vmul.f32 %v1260, %v594
        %v1277 = vmul.f32 %v1261, %v598
        %v1278 = vmul.f32 %v1262, %v602
        %v1279 = vmul.f32 %v1263, %v590
        %v1280 = vmul.f32 %v1264, %v594
        %v1281 = vmul.f32 %v1265, %v598
        %v1282 = vmul.f32 %v1266, %v602
        %v1283 = vsel %vm846, %v1267, 0.0
        %v1284 = vsel %vm846, %v1268, 0.0
        %v1285 = vadd.f32 %v1283, %v1284
        %v1286 = vsel %vm846, %v1269, 0.0
        %v1287 = vadd.f32 %v1285, %v1286
        %v1288 = vsel %vm846, %v1270, 0.0
        %v1289 = vadd.f32 %v1287, %v1288
        %v1290 = vrot.slane %v1289, 4
        %v1291 = vadd.f32 %v1289, %v1290
        %v1292 = vrot.slane %v1291, 2
        %v1293 = vadd.f32 %v1291, %v1292
        %v1294 = vrot.slane %v1293, 1
        %v1295 = vadd.f32 %v1293, %v1294
        %v1296 = vsel %vm846, %v1271, 0.0
        %v1297 = vsel %vm846, %v1272, 0.0
        %v1298 = vadd.f32 %v1296, %v1297
        %v1299 = vsel %vm846, %v1273, 0.0
        %v1300 = vadd.f32 %v1298, %v1299
        %v1301 = vsel %vm846, %v1274, 0.0
        %v1302 = vadd.f32 %v1300, %v1301
        %v1303 = vrot.slane %v1302, 4
        %v1304 = vadd.f32 %v1302, %v1303
        %v1305 = vrot.slane %v1304, 2
        %v1306 = vadd.f32 %v1304, %v1305
        %v1307 = vrot.slane %v1306, 1
        %v1308 = vadd.f32 %v1306, %v1307
        %v1309 = vsel %vm846, %v1275, 0.0
        %v1310 = vsel %vm846, %v1276, 0.0
        %v1311 = vadd.f32 %v1309, %v1310
        %v1312 = vsel %vm846, %v1277, 0.0
        %v1313 = vadd.f32 %v1311, %v1312
        %v1314 = vsel %vm846, %v1278, 0.0
        %v1315 = vadd.f32 %v1313, %v1314
        %v1316 = vrot.slane %v1315, 4
        %v1317 = vadd.f32 %v1315, %v1316
        %v1318 = vrot.slane %v1317, 2
        %v1319 = vadd.f32 %v1317, %v1318
        %v1320 = vrot.slane %v1319, 1
        %v1321 = vadd.f32 %v1319, %v1320
        %v1322 = vsel %vm846, %v1279, 0.0
        %v1323 = vsel %vm846, %v1280, 0.0
        %v1324 = vadd.f32 %v1322, %v1323
        %v1325 = vsel %vm846, %v1281, 0.0
        %v1326 = vadd.f32 %v1324, %v1325
        %v1327 = vsel %vm846, %v1282, 0.0
        %v1328 = vadd.f32 %v1326, %v1327
        %v1329 = vrot.slane %v1328, 4
        %v1330 = vadd.f32 %v1328, %v1329
        %v1331 = vrot.slane %v1330, 2
        %v1332 = vadd.f32 %v1330, %v1331
        %v1333 = vrot.slane %v1332, 1
        %v1334 = vadd.f32 %v1332, %v1333
        %v1335 = vlaneseq
        %v1336 = vshrl.u32 %v1335, 7
        %v1337 = vsub.s32 1, %v1336
        %v1338 = vrot.slane %v900, %v1337
        %vm1339 = vcmp.eq.s32.totalorder %v1338, 1
        %v1344 = vsel %vm667, %v1308, %v1295
        %v1345 = vsel %vm669, %v1321, %v1344
        %v1346 = vsel %vm671, %v1334, %v1345
        %v1348 = vsel %vm1339, %v1346, -1e+30
        %v1349 = vsel %vm915, %v1348, -inf
        %1350 = vmax.xlane.f32.xlu0 %v1349
        %v1351 = vpop.xlane.xlu0 %1350
        %v1352 = vsub.f32 %v1348, %v1351
        %v1353 = vmul.f32 %v1352, 1.442695
        %v1354 = vpow.pop %v1353
        %v1355 = vsel %vm915, %v1354, 0.0
        %1356 = vadd.xlane.f32.xlu0 %v1355
        %v1357 = vpop.xlane.xlu0 %1356
        %v1358 = vrcp.pop %v1357
        %v1359 = vmul.f32 1.0, %v1358
        %v1360 = vmul.f32 %v1354, %v1359
        %v1361 = vrot.slane %v297, 1
        %v1362 = vsel %vm667, %v298, %v1361
        %v1363 = vrot.slane %v299, 7
        %v1364 = vsel %vm669, %v1363, %v1362
        %v1365 = vrot.slane %v300, 6
        %v1366 = vsel %vm671, %v1365, %v1364
        %v1367 = vrot.slane %v301, 5
        %v1368 = vsel %vm673, %v1367, %v1366
        %v1369 = vrot.slane %v302, 4
        %v1370 = vsel %vm675, %v1369, %v1368
        %v1371 = vrot.slane %v303, 3
        %v1372 = vsel %vm677, %v1371, %v1370
        %v1373 = vrot.slane %v304, 2
        %v1374 = vsel %vm679, %v1373, %v1372
        %v1375 = vrot.slane %v305, 1
        %v1376 = vsel %vm667, %v306, %v1375
        %v1377 = vrot.slane %v307, 7
        %v1378 = vsel %vm669, %v1377, %v1376
        %v1379 = vrot.slane %v308, 6
        %v1380 = vsel %vm671, %v1379, %v1378
        %v1381 = vrot.slane %v309, 5
        %v1382 = vsel %vm673, %v1381, %v1380
        %v1383 = vrot.slane %v310, 4
        %v1384 = vsel %vm675, %v1383, %v1382
        %v1385 = vrot.slane %v311, 3
        %v1386 = vsel %vm677, %v1385, %v1384
        %v1387 = vrot.slane %v312, 2
        %v1388 = vsel %vm679, %v1387, %v1386
        %v1392 = vsel %vm846, %v1360, 0
        %1394 = vmatprep.subr.mxu0 0.0
        %1395 = vmatpush1.msra.mxu0 0.0
        %1396 = vmatprep.subr.mxu0 0.0
        %1397 = vmatpush1.msra.mxu0 0.0
        %1398 = vmatprep.subr.mxu0 0.0
        %1399 = vmatpush1.msra.mxu0 0.0
        %1400 = vmatprep.subr.mxu0 0.0
        %1401 = vmatpush1.msra.mxu0 0.0
        %1402 = vmatprep.subr.mxu0 0.0
        %1403 = vmatpush1.msra.mxu0 0.0
        %1404 = vmatprep.subr.mxu0 0.0
        %1405 = vmatpush1.msra.mxu0 0.0
        %1406 = vmatprep.subr.mxu0 0.0
        %1407 = vmatpush1.msra.mxu0 0.0
        %1408 = vmatprep.subr.mxu0 0.0
        %1409 = vmatpush1.msra.mxu0 0.0
        %1410 = vmatprep.subr.mxu0 0.0
        %1411 = vmatpush1.msra.mxu0 0.0
        %1412 = vmatprep.subr.mxu0 0.0
        %1413 = vmatpush1.msra.mxu0 0.0
        %1414 = vmatprep.subr.mxu0 0.0
        %1415 = vmatpush1.msra.mxu0 0.0
        %1416 = vmatprep.subr.mxu0 0.0
        %1417 = vmatpush1.msra.mxu0 0.0
        %1418 = vmatprep.subr.mxu0 0.0
        %1419 = vmatpush1.msra.mxu0 0.0
        %1420 = vmatprep.subr.mxu0 0.0
        %1421 = vmatpush1.msra.mxu0 0.0
        %1422 = vmatprep.subr.mxu0 0.0
        %1423 = vmatpush1.msra.mxu0 %v1388
        %1424 = vmatprep.subr.mxu0 0.0
        %1425 = vmatpush1.msra.mxu0 %v1374
        %1426 = vmatprep.subr.mxu0 0.0
        %1427 = vmatpush2.msra.mxu0 0.0
        %1428 = vmatprep.subr.mxu0 0.0
        %1429 = vmatpush2.msra.mxu0 0.0
        %1430 = vmatprep.subr.mxu0 0.0
        %1431 = vmatpush2.msra.mxu0 0.0
        %1432 = vmatprep.subr.mxu0 0.0
        %1433 = vmatpush2.msra.mxu0 0.0
        %1434 = vmatprep.subr.mxu0 0.0
        %1435 = vmatpush2.msra.mxu0 0.0
        %1436 = vmatprep.subr.mxu0 0.0
        %1437 = vmatpush2.msra.mxu0 0.0
        %1438 = vmatprep.subr.mxu0 0.0
        %1439 = vmatpush2.msra.mxu0 0.0
        %1440 = vmatprep.subr.mxu0 0.0
        %1441 = vmatpush2.msra.mxu0 0.0
        %1442 = vmatprep.subr.mxu0 0.0
        %1443 = vmatpush2.msra.mxu0 0.0
        %1444 = vmatprep.subr.mxu0 0.0
        %1445 = vmatpush2.msra.mxu0 0.0
        %1446 = vmatprep.subr.mxu0 0.0
        %1447 = vmatpush2.msra.mxu0 0.0
        %1448 = vmatprep.subr.mxu0 0.0
        %1449 = vmatpush2.msra.mxu0 0.0
        %1450 = vmatprep.subr.mxu0 0.0
        %1451 = vmatpush2.msra.mxu0 0.0
        %1452 = vmatprep.subr.mxu0 0.0
        %1453 = vmatpush2.msra.mxu0 0.0
        %1454 = vmatprep.subr.mxu0 0.0
        %1455 = vmatpush2.msra.mxu0 0.0
        %1456 = vmatprep.subr.mxu0 0.0
        %1457 = vmatpush2.msra.mxu0 0.0
        %1458 = vmatprep.mubr.f32.mxu0 0.0
        %1459 = vmatmul.mubr.f32.gmra.mxu0 %v1392
        %v1460 = vpop.f32.mrf.mxu0
        %v1461 = vadd.f32 0.0, %v1460
        %v1462 = vpop.f32.mrf.mxu0
        %1463 = vdwg.mxu0
        %v1464 = vlaneseq
        %v1465 = vshrl.u32 %v1464, 7
        %v1466 = vsub.s32 2, %v1465
        %v1467 = vrot.slane %v530, %v1466
        %v1468 = vlaneseq
        %v1469 = vshrl.u32 %v1468, 7
        %v1470 = vsub.s32 2, %v1469
        %v1471 = vrot.slane %v576, %v1470
        %v1472 = vlaneseq
        %v1473 = vshrl.u32 %v1472, 7
        %v1474 = vsub.s32 2, %v1473
        %v1475 = vrot.slane %v535, %v1474
        %v1476 = vlaneseq
        %v1477 = vshrl.u32 %v1476, 7
        %v1478 = vsub.s32 2, %v1477
        %v1479 = vrot.slane %v577, %v1478
        %v1480 = vlaneseq
        %v1481 = vshrl.u32 %v1480, 7
        %v1482 = vsub.s32 2, %v1481
        %v1483 = vrot.slane %v540, %v1482
        %v1484 = vlaneseq
        %v1485 = vshrl.u32 %v1484, 7
        %v1486 = vsub.s32 2, %v1485
        %v1487 = vrot.slane %v578, %v1486
        %v1488 = vlaneseq
        %v1489 = vshrl.u32 %v1488, 7
        %v1490 = vsub.s32 2, %v1489
        %v1491 = vrot.slane %v545, %v1490
        %v1492 = vlaneseq
        %v1493 = vshrl.u32 %v1492, 7
        %v1494 = vsub.s32 2, %v1493
        %v1495 = vrot.slane %v579, %v1494
        %v1496 = vlaneseq
        %v1497 = vshrl.u32 %v1496, 7
        %v1498 = vsub.s32 2, %v1497
        %v1499 = vrot.slane %v550, %v1498
        %v1500 = vlaneseq
        %v1501 = vshrl.u32 %v1500, 7
        %v1502 = vsub.s32 2, %v1501
        %v1503 = vrot.slane %v580, %v1502
        %v1504 = vlaneseq
        %v1505 = vshrl.u32 %v1504, 7
        %v1506 = vsub.s32 2, %v1505
        %v1507 = vrot.slane %v555, %v1506
        %v1508 = vlaneseq
        %v1509 = vshrl.u32 %v1508, 7
        %v1510 = vsub.s32 2, %v1509
        %v1511 = vrot.slane %v581, %v1510
        %v1512 = vlaneseq
        %v1513 = vshrl.u32 %v1512, 7
        %v1514 = vsub.s32 2, %v1513
        %v1515 = vrot.slane %v560, %v1514
        %v1516 = vlaneseq
        %v1517 = vshrl.u32 %v1516, 7
        %v1518 = vsub.s32 2, %v1517
        %v1519 = vrot.slane %v582, %v1518
        %v1520 = vlaneseq
        %v1521 = vshrl.u32 %v1520, 7
        %v1522 = vsub.s32 2, %v1521
        %v1523 = vrot.slane %v565, %v1522
        %v1524 = vlaneseq
        %v1525 = vshrl.u32 %v1524, 7
        %v1526 = vsub.s32 2, %v1525
        %v1527 = vrot.slane %v583, %v1526
        %v1528 = vsel %vm667, %v1471, %v1467
        %v1529 = vsel %vm669, %v1475, %v1528
        %v1530 = vsel %vm671, %v1479, %v1529
        %v1531 = vsel %vm673, %v1483, %v1530
        %v1532 = vsel %vm675, %v1487, %v1531
        %v1533 = vsel %vm677, %v1491, %v1532
        %v1534 = vsel %vm679, %v1495, %v1533
        %v1535 = vsel %vm667, %v1503, %v1499
        %v1536 = vsel %vm669, %v1507, %v1535
        %v1537 = vsel %vm671, %v1511, %v1536
        %v1538 = vsel %vm673, %v1515, %v1537
        %v1539 = vsel %vm675, %v1519, %v1538
        %v1540 = vsel %vm677, %v1523, %v1539
        %v1541 = vsel %vm679, %v1527, %v1540
        %1544 = vxpose.xlu0.b32.start [1/16] %v1534, 128
        %1545 = vxpose.xlu0.b32.cont [2/16] %v1541, 128
        %1546 = vxpose.xlu0.b32.cont [3/16] 0.0, 128
        %1547 = vxpose.xlu0.b32.cont [4/16] 0.0, 128
        %1548 = vxpose.xlu0.b32.cont [5/16] 0.0, 128
        %1549 = vxpose.xlu0.b32.cont [6/16] 0.0, 128
        %1550 = vxpose.xlu0.b32.cont [7/16] 0.0, 128
        %1551 = vxpose.xlu0.b32.cont [8/16] 0.0, 128
        %1552 = vxpose.xlu0.b32.cont [9/16] 0.0, 128
        %1553 = vxpose.xlu0.b32.cont [10/16] 0.0, 128
        %1554 = vxpose.xlu0.b32.cont [11/16] 0.0, 128
        %1555 = vxpose.xlu0.b32.cont [12/16] 0.0, 128
        %1556 = vxpose.xlu0.b32.cont [13/16] 0.0, 128
        %1557 = vxpose.xlu0.b32.cont [14/16] 0.0, 128
        %1558 = vxpose.xlu0.b32.cont [15/16] 0.0, 128
        %1559 = vxpose.xlu0.b32.end [16/16] 0.0, 128
        %v1560 = vpop.trf.xlu0
        %v1561 = vpop.trf.xlu0
        %v1562 = vpop.trf.xlu0
        %v1563 = vpop.trf.xlu0
        %v1564 = vpop.trf.xlu0
        %v1565 = vpop.trf.xlu0
        %v1566 = vpop.trf.xlu0
        %v1567 = vpop.trf.xlu0
        %v1568 = vpop.trf.xlu0
        %v1569 = vpop.trf.xlu0
        %v1570 = vpop.trf.xlu0
        %v1571 = vpop.trf.xlu0
        %v1572 = vpop.trf.xlu0
        %v1573 = vpop.trf.xlu0
        %v1574 = vpop.trf.xlu0
        %v1575 = vpop.trf.xlu0
        %v1576 = vlaneseq
        %v1577 = vshrl.u32 %v1576, 7
        %v1578 = vsub.s32 2, %v1577
        %v1579 = vrot.slane %v408, %v1578
        %1581 = vbcast.lane.b32.xlu0 %v1579, 256
        %v1582 = vpop.permute.xlu0 %1581
        %s1584 = sor.u32 256, 8
        %1585 = vbcast.lane.b32.xlu0 %v1579, %s1584
        %v1586 = vpop.permute.xlu0 %1585
        %s1588 = sor.u32 256, 16
        %1589 = vbcast.lane.b32.xlu0 %v1579, %s1588
        %v1590 = vpop.permute.xlu0 %1589
        %s1592 = sor.u32 256, 24
        %1593 = vbcast.lane.b32.xlu0 %v1579, %s1592
        %v1594 = vpop.permute.xlu0 %1593
        %v1595 = vlaneseq
        %v1596 = vshrl.u32 %v1595, 7
        %v1597 = vsub.s32 2, %v1596
        %v1598 = vrot.slane %v418, %v1597
        %1600 = vbcast.lane.b32.xlu0 %v1598, 256
        %v1601 = vpop.permute.xlu0 %1600
        %s1603 = sor.u32 256, 8
        %1604 = vbcast.lane.b32.xlu0 %v1598, %s1603
        %v1605 = vpop.permute.xlu0 %1604
        %s1607 = sor.u32 256, 16
        %1608 = vbcast.lane.b32.xlu0 %v1598, %s1607
        %v1609 = vpop.permute.xlu0 %1608
        %s1611 = sor.u32 256, 24
        %1612 = vbcast.lane.b32.xlu0 %v1598, %s1611
        %v1613 = vpop.permute.xlu0 %1612
        %v1614 = vlaneseq
        %v1615 = vshrl.u32 %v1614, 7
        %v1616 = vsub.s32 2, %v1615
        %v1617 = vrot.slane %v413, %v1616
        %1619 = vbcast.lane.b32.xlu0 %v1617, 256
        %v1620 = vpop.permute.xlu0 %1619
        %s1622 = sor.u32 256, 8
        %1623 = vbcast.lane.b32.xlu0 %v1617, %s1622
        %v1624 = vpop.permute.xlu0 %1623
        %s1626 = sor.u32 256, 16
        %1627 = vbcast.lane.b32.xlu0 %v1617, %s1626
        %v1628 = vpop.permute.xlu0 %1627
        %s1630 = sor.u32 256, 24
        %1631 = vbcast.lane.b32.xlu0 %v1617, %s1630
        %v1632 = vpop.permute.xlu0 %1631
        %v1633 = vlaneseq
        %v1634 = vshrl.u32 %v1633, 7
        %v1635 = vsub.s32 2, %v1634
        %v1636 = vrot.slane %v419, %v1635
        %1638 = vbcast.lane.b32.xlu0 %v1636, 256
        %v1639 = vpop.permute.xlu0 %1638
        %s1641 = sor.u32 256, 8
        %1642 = vbcast.lane.b32.xlu0 %v1636, %s1641
        %v1643 = vpop.permute.xlu0 %1642
        %s1645 = sor.u32 256, 16
        %1646 = vbcast.lane.b32.xlu0 %v1636, %s1645
        %v1647 = vpop.permute.xlu0 %1646
        %s1649 = sor.u32 256, 24
        %1650 = vbcast.lane.b32.xlu0 %v1636, %s1649
        %v1651 = vpop.permute.xlu0 %1650
        %v1652 = vadd.f32 %v1582, %v1560
        %v1653 = vadd.f32 %v1586, %v1561
        %v1654 = vadd.f32 %v1590, %v1562
        %v1655 = vadd.f32 %v1594, %v1563
        %v1656 = vadd.f32 %v1601, %v1560
        %v1657 = vadd.f32 %v1605, %v1561
        %v1658 = vadd.f32 %v1609, %v1562
        %v1659 = vadd.f32 %v1613, %v1563
        %v1660 = vadd.f32 %v1620, %v1560
        %v1661 = vadd.f32 %v1624, %v1561
        %v1662 = vadd.f32 %v1628, %v1562
        %v1663 = vadd.f32 %v1632, %v1563
        %v1664 = vadd.f32 %v1639, %v1560
        %v1665 = vadd.f32 %v1643, %v1561
        %v1666 = vadd.f32 %v1647, %v1562
        %v1667 = vadd.f32 %v1651, %v1563
        %v1668 = vtanh.pop %v1652
        %v1669 = vtanh.pop %v1653
        %v1670 = vtanh.pop %v1654
        %v1671 = vtanh.pop %v1655
        %v1672 = vtanh.pop %v1656
        %v1673 = vtanh.pop %v1657
        %v1674 = vtanh.pop %v1658
        %v1675 = vtanh.pop %v1659
        %v1676 = vtanh.pop %v1660
        %v1677 = vtanh.pop %v1661
        %v1678 = vtanh.pop %v1662
        %v1679 = vtanh.pop %v1663
        %v1680 = vtanh.pop %v1664
        %v1681 = vtanh.pop %v1665
        %v1682 = vtanh.pop %v1666
        %v1683 = vtanh.pop %v1667
        %v1684 = vmul.f32 %v1668, %v590
        %v1685 = vmul.f32 %v1669, %v594
        %v1686 = vmul.f32 %v1670, %v598
        %v1687 = vmul.f32 %v1671, %v602
        %v1688 = vmul.f32 %v1672, %v590
        %v1689 = vmul.f32 %v1673, %v594
        %v1690 = vmul.f32 %v1674, %v598
        %v1691 = vmul.f32 %v1675, %v602
        %v1692 = vmul.f32 %v1676, %v590
        %v1693 = vmul.f32 %v1677, %v594
        %v1694 = vmul.f32 %v1678, %v598
        %v1695 = vmul.f32 %v1679, %v602
        %v1696 = vmul.f32 %v1680, %v590
        %v1697 = vmul.f32 %v1681, %v594
        %v1698 = vmul.f32 %v1682, %v598
        %v1699 = vmul.f32 %v1683, %v602
        %v1700 = vsel %vm846, %v1684, 0.0
        %v1701 = vsel %vm846, %v1685, 0.0
        %v1702 = vadd.f32 %v1700, %v1701
        %v1703 = vsel %vm846, %v1686, 0.0
        %v1704 = vadd.f32 %v1702, %v1703
        %v1705 = vsel %vm846, %v1687, 0.0
        %v1706 = vadd.f32 %v1704, %v1705
        %v1707 = vrot.slane %v1706, 4
        %v1708 = vadd.f32 %v1706, %v1707
        %v1709 = vrot.slane %v1708, 2
        %v1710 = vadd.f32 %v1708, %v1709
        %v1711 = vrot.slane %v1710, 1
        %v1712 = vadd.f32 %v1710, %v1711
        %v1713 = vsel %vm846, %v1688, 0.0
        %v1714 = vsel %vm846, %v1689, 0.0
        %v1715 = vadd.f32 %v1713, %v1714
        %v1716 = vsel %vm846, %v1690, 0.0
        %v1717 = vadd.f32 %v1715, %v1716
        %v1718 = vsel %vm846, %v1691, 0.0
        %v1719 = vadd.f32 %v1717, %v1718
        %v1720 = vrot.slane %v1719, 4
        %v1721 = vadd.f32 %v1719, %v1720
        %v1722 = vrot.slane %v1721, 2
        %v1723 = vadd.f32 %v1721, %v1722
        %v1724 = vrot.slane %v1723, 1
        %v1725 = vadd.f32 %v1723, %v1724
        %v1726 = vsel %vm846, %v1692, 0.0
        %v1727 = vsel %vm846, %v1693, 0.0
        %v1728 = vadd.f32 %v1726, %v1727
        %v1729 = vsel %vm846, %v1694, 0.0
        %v1730 = vadd.f32 %v1728, %v1729
        %v1731 = vsel %vm846, %v1695, 0.0
        %v1732 = vadd.f32 %v1730, %v1731
        %v1733 = vrot.slane %v1732, 4
        %v1734 = vadd.f32 %v1732, %v1733
        %v1735 = vrot.slane %v1734, 2
        %v1736 = vadd.f32 %v1734, %v1735
        %v1737 = vrot.slane %v1736, 1
        %v1738 = vadd.f32 %v1736, %v1737
        %v1739 = vsel %vm846, %v1696, 0.0
        %v1740 = vsel %vm846, %v1697, 0.0
        %v1741 = vadd.f32 %v1739, %v1740
        %v1742 = vsel %vm846, %v1698, 0.0
        %v1743 = vadd.f32 %v1741, %v1742
        %v1744 = vsel %vm846, %v1699, 0.0
        %v1745 = vadd.f32 %v1743, %v1744
        %v1746 = vrot.slane %v1745, 4
        %v1747 = vadd.f32 %v1745, %v1746
        %v1748 = vrot.slane %v1747, 2
        %v1749 = vadd.f32 %v1747, %v1748
        %v1750 = vrot.slane %v1749, 1
        %v1751 = vadd.f32 %v1749, %v1750
        %v1752 = vlaneseq
        %v1753 = vshrl.u32 %v1752, 7
        %v1754 = vsub.s32 2, %v1753
        %v1755 = vrot.slane %v900, %v1754
        %vm1756 = vcmp.eq.s32.totalorder %v1755, 1
        %v1761 = vsel %vm667, %v1725, %v1712
        %v1762 = vsel %vm669, %v1738, %v1761
        %v1763 = vsel %vm671, %v1751, %v1762
        %v1765 = vsel %vm1756, %v1763, -1e+30
        %v1766 = vsel %vm915, %v1765, -inf
        %1767 = vmax.xlane.f32.xlu0 %v1766
        %v1768 = vpop.xlane.xlu0 %1767
        %v1769 = vsub.f32 %v1765, %v1768
        %v1770 = vmul.f32 %v1769, 1.442695
        %v1771 = vpow.pop %v1770
        %v1772 = vsel %vm915, %v1771, 0.0
        %1773 = vadd.xlane.f32.xlu0 %v1772
        %v1774 = vpop.xlane.xlu0 %1773
        %v1775 = vrcp.pop %v1774
        %v1776 = vmul.f32 1.0, %v1775
        %v1777 = vmul.f32 %v1771, %v1776
        %v1778 = vrot.slane %v297, 2
        %v1779 = vrot.slane %v298, 1
        %v1780 = vsel %vm667, %v1779, %v1778
        %v1781 = vsel %vm669, %v299, %v1780
        %v1782 = vrot.slane %v300, 7
        %v1783 = vsel %vm671, %v1782, %v1781
        %v1784 = vrot.slane %v301, 6
        %v1785 = vsel %vm673, %v1784, %v1783
        %v1786 = vrot.slane %v302, 5
        %v1787 = vsel %vm675, %v1786, %v1785
        %v1788 = vrot.slane %v303, 4
        %v1789 = vsel %vm677, %v1788, %v1787
        %v1790 = vrot.slane %v304, 3
        %v1791 = vsel %vm679, %v1790, %v1789
        %v1792 = vrot.slane %v305, 2
        %v1793 = vrot.slane %v306, 1
        %v1794 = vsel %vm667, %v1793, %v1792
        %v1795 = vsel %vm669, %v307, %v1794
        %v1796 = vrot.slane %v308, 7
        %v1797 = vsel %vm671, %v1796, %v1795
        %v1798 = vrot.slane %v309, 6
        %v1799 = vsel %vm673, %v1798, %v1797
        %v1800 = vrot.slane %v310, 5
        %v1801 = vsel %vm675, %v1800, %v1799
        %v1802 = vrot.slane %v311, 4
        %v1803 = vsel %vm677, %v1802, %v1801
        %v1804 = vrot.slane %v312, 3
        %v1805 = vsel %vm679, %v1804, %v1803
        %v1809 = vsel %vm846, %v1777, 0
        %1811 = vmatprep.subr.mxu0 0.0
        %1812 = vmatpush1.msra.mxu0 0.0
        %1813 = vmatprep.subr.mxu0 0.0
        %1814 = vmatpush1.msra.mxu0 0.0
        %1815 = vmatprep.subr.mxu0 0.0
        %1816 = vmatpush1.msra.mxu0 0.0
        %1817 = vmatprep.subr.mxu0 0.0
        %1818 = vmatpush1.msra.mxu0 0.0
        %1819 = vmatprep.subr.mxu0 0.0
        %1820 = vmatpush1.msra.mxu0 0.0
        %1821 = vmatprep.subr.mxu0 0.0
        %1822 = vmatpush1.msra.mxu0 0.0
        %1823 = vmatprep.subr.mxu0 0.0
        %1824 = vmatpush1.msra.mxu0 0.0
        %1825 = vmatprep.subr.mxu0 0.0
        %1826 = vmatpush1.msra.mxu0 0.0
        %1827 = vmatprep.subr.mxu0 0.0
        %1828 = vmatpush1.msra.mxu0 0.0
        %1829 = vmatprep.subr.mxu0 0.0
        %1830 = vmatpush1.msra.mxu0 0.0
        %1831 = vmatprep.subr.mxu0 0.0
        %1832 = vmatpush1.msra.mxu0 0.0
        %1833 = vmatprep.subr.mxu0 0.0
        %1834 = vmatpush1.msra.mxu0 0.0
        %1835 = vmatprep.subr.mxu0 0.0
        %1836 = vmatpush1.msra.mxu0 0.0
        %1837 = vmatprep.subr.mxu0 0.0
        %1838 = vmatpush1.msra.mxu0 0.0
        %1839 = vmatprep.subr.mxu0 0.0
        %1840 = vmatpush1.msra.mxu0 %v1805
        %1841 = vmatprep.subr.mxu0 0.0
        %1842 = vmatpush1.msra.mxu0 %v1791
        %1843 = vmatprep.subr.mxu0 0.0
        %1844 = vmatpush2.msra.mxu0 0.0
        %1845 = vmatprep.subr.mxu0 0.0
        %1846 = vmatpush2.msra.mxu0 0.0
        %1847 = vmatprep.subr.mxu0 0.0
        %1848 = vmatpush2.msra.mxu0 0.0
        %1849 = vmatprep.subr.mxu0 0.0
        %1850 = vmatpush2.msra.mxu0 0.0
        %1851 = vmatprep.subr.mxu0 0.0
        %1852 = vmatpush2.msra.mxu0 0.0
        %1853 = vmatprep.subr.mxu0 0.0
        %1854 = vmatpush2.msra.mxu0 0.0
        %1855 = vmatprep.subr.mxu0 0.0
        %1856 = vmatpush2.msra.mxu0 0.0
        %1857 = vmatprep.subr.mxu0 0.0
        %1858 = vmatpush2.msra.mxu0 0.0
        %1859 = vmatprep.subr.mxu0 0.0
        %1860 = vmatpush2.msra.mxu0 0.0
        %1861 = vmatprep.subr.mxu0 0.0
        %1862 = vmatpush2.msra.mxu0 0.0
        %1863 = vmatprep.subr.mxu0 0.0
        %1864 = vmatpush2.msra.mxu0 0.0
        %1865 = vmatprep.subr.mxu0 0.0
        %1866 = vmatpush2.msra.mxu0 0.0
        %1867 = vmatprep.subr.mxu0 0.0
        %1868 = vmatpush2.msra.mxu0 0.0
        %1869 = vmatprep.subr.mxu0 0.0
        %1870 = vmatpush2.msra.mxu0 0.0
        %1871 = vmatprep.subr.mxu0 0.0
        %1872 = vmatpush2.msra.mxu0 0.0
        %1873 = vmatprep.subr.mxu0 0.0
        %1874 = vmatpush2.msra.mxu0 0.0
        %1875 = vmatprep.mubr.f32.mxu0 0.0
        %1876 = vmatmul.mubr.f32.gmra.mxu0 %v1809
        %v1877 = vpop.f32.mrf.mxu0
        %v1878 = vadd.f32 0.0, %v1877
        %v1879 = vpop.f32.mrf.mxu0
        %1880 = vdwg.mxu0
        %v1881 = vlaneseq
        %v1882 = vshrl.u32 %v1881, 7
        %v1883 = vsub.s32 3, %v1882
        %v1884 = vrot.slane %v530, %v1883
        %v1885 = vlaneseq
        %v1886 = vshrl.u32 %v1885, 7
        %v1887 = vsub.s32 3, %v1886
        %v1888 = vrot.slane %v576, %v1887
        %v1889 = vlaneseq
        %v1890 = vshrl.u32 %v1889, 7
        %v1891 = vsub.s32 3, %v1890
        %v1892 = vrot.slane %v535, %v1891
        %v1893 = vlaneseq
        %v1894 = vshrl.u32 %v1893, 7
        %v1895 = vsub.s32 3, %v1894
        %v1896 = vrot.slane %v577, %v1895
        %v1897 = vlaneseq
        %v1898 = vshrl.u32 %v1897, 7
        %v1899 = vsub.s32 3, %v1898
        %v1900 = vrot.slane %v540, %v1899
        %v1901 = vlaneseq
        %v1902 = vshrl.u32 %v1901, 7
        %v1903 = vsub.s32 3, %v1902
        %v1904 = vrot.slane %v578, %v1903
        %v1905 = vlaneseq
        %v1906 = vshrl.u32 %v1905, 7
        %v1907 = vsub.s32 3, %v1906
        %v1908 = vrot.slane %v545, %v1907
        %v1909 = vlaneseq
        %v1910 = vshrl.u32 %v1909, 7
        %v1911 = vsub.s32 3, %v1910
        %v1912 = vrot.slane %v579, %v1911
        %v1913 = vlaneseq
        %v1914 = vshrl.u32 %v1913, 7
        %v1915 = vsub.s32 3, %v1914
        %v1916 = vrot.slane %v550, %v1915
        %v1917 = vlaneseq
        %v1918 = vshrl.u32 %v1917, 7
        %v1919 = vsub.s32 3, %v1918
        %v1920 = vrot.slane %v580, %v1919
        %v1921 = vlaneseq
        %v1922 = vshrl.u32 %v1921, 7
        %v1923 = vsub.s32 3, %v1922
        %v1924 = vrot.slane %v555, %v1923
        %v1925 = vlaneseq
        %v1926 = vshrl.u32 %v1925, 7
        %v1927 = vsub.s32 3, %v1926
        %v1928 = vrot.slane %v581, %v1927
        %v1929 = vlaneseq
        %v1930 = vshrl.u32 %v1929, 7
        %v1931 = vsub.s32 3, %v1930
        %v1932 = vrot.slane %v560, %v1931
        %v1933 = vlaneseq
        %v1934 = vshrl.u32 %v1933, 7
        %v1935 = vsub.s32 3, %v1934
        %v1936 = vrot.slane %v582, %v1935
        %v1937 = vlaneseq
        %v1938 = vshrl.u32 %v1937, 7
        %v1939 = vsub.s32 3, %v1938
        %v1940 = vrot.slane %v565, %v1939
        %v1941 = vlaneseq
        %v1942 = vshrl.u32 %v1941, 7
        %v1943 = vsub.s32 3, %v1942
        %v1944 = vrot.slane %v583, %v1943
        %v1945 = vsel %vm667, %v1888, %v1884
        %v1946 = vsel %vm669, %v1892, %v1945
        %v1947 = vsel %vm671, %v1896, %v1946
        %v1948 = vsel %vm673, %v1900, %v1947
        %v1949 = vsel %vm675, %v1904, %v1948
        %v1950 = vsel %vm677, %v1908, %v1949
        %v1951 = vsel %vm679, %v1912, %v1950
        %v1952 = vsel %vm667, %v1920, %v1916
        %v1953 = vsel %vm669, %v1924, %v1952
        %v1954 = vsel %vm671, %v1928, %v1953
        %v1955 = vsel %vm673, %v1932, %v1954
        %v1956 = vsel %vm675, %v1936, %v1955
        %v1957 = vsel %vm677, %v1940, %v1956
        %v1958 = vsel %vm679, %v1944, %v1957
        %1961 = vxpose.xlu0.b32.start [1/16] %v1951, 128
        %1962 = vxpose.xlu0.b32.cont [2/16] %v1958, 128
        %1963 = vxpose.xlu0.b32.cont [3/16] 0.0, 128
        %1964 = vxpose.xlu0.b32.cont [4/16] 0.0, 128
        %1965 = vxpose.xlu0.b32.cont [5/16] 0.0, 128
        %1966 = vxpose.xlu0.b32.cont [6/16] 0.0, 128
        %1967 = vxpose.xlu0.b32.cont [7/16] 0.0, 128
        %1968 = vxpose.xlu0.b32.cont [8/16] 0.0, 128
        %1969 = vxpose.xlu0.b32.cont [9/16] 0.0, 128
        %1970 = vxpose.xlu0.b32.cont [10/16] 0.0, 128
        %1971 = vxpose.xlu0.b32.cont [11/16] 0.0, 128
        %1972 = vxpose.xlu0.b32.cont [12/16] 0.0, 128
        %1973 = vxpose.xlu0.b32.cont [13/16] 0.0, 128
        %1974 = vxpose.xlu0.b32.cont [14/16] 0.0, 128
        %1975 = vxpose.xlu0.b32.cont [15/16] 0.0, 128
        %1976 = vxpose.xlu0.b32.end [16/16] 0.0, 128
        %v1977 = vpop.trf.xlu0
        %v1978 = vpop.trf.xlu0
        %v1979 = vpop.trf.xlu0
        %v1980 = vpop.trf.xlu0
        %v1981 = vpop.trf.xlu0
        %v1982 = vpop.trf.xlu0
        %v1983 = vpop.trf.xlu0
        %v1984 = vpop.trf.xlu0
        %v1985 = vpop.trf.xlu0
        %v1986 = vpop.trf.xlu0
        %v1987 = vpop.trf.xlu0
        %v1988 = vpop.trf.xlu0
        %v1989 = vpop.trf.xlu0
        %v1990 = vpop.trf.xlu0
        %v1991 = vpop.trf.xlu0
        %v1992 = vpop.trf.xlu0
        %v1993 = vlaneseq
        %v1994 = vshrl.u32 %v1993, 7
        %v1995 = vsub.s32 3, %v1994
        %v1996 = vrot.slane %v408, %v1995
        %1998 = vbcast.lane.b32.xlu0 %v1996, 256
        %v1999 = vpop.permute.xlu0 %1998
        %s2001 = sor.u32 256, 8
        %2002 = vbcast.lane.b32.xlu0 %v1996, %s2001
        %v2003 = vpop.permute.xlu0 %2002
        %s2005 = sor.u32 256, 16
        %2006 = vbcast.lane.b32.xlu0 %v1996, %s2005
        %v2007 = vpop.permute.xlu0 %2006
        %s2009 = sor.u32 256, 24
        %2010 = vbcast.lane.b32.xlu0 %v1996, %s2009
        %v2011 = vpop.permute.xlu0 %2010
        %v2012 = vlaneseq
        %v2013 = vshrl.u32 %v2012, 7
        %v2014 = vsub.s32 3, %v2013
        %v2015 = vrot.slane %v418, %v2014
        %2017 = vbcast.lane.b32.xlu0 %v2015, 256
        %v2018 = vpop.permute.xlu0 %2017
        %s2020 = sor.u32 256, 8
        %2021 = vbcast.lane.b32.xlu0 %v2015, %s2020
        %v2022 = vpop.permute.xlu0 %2021
        %s2024 = sor.u32 256, 16
        %2025 = vbcast.lane.b32.xlu0 %v2015, %s2024
        %v2026 = vpop.permute.xlu0 %2025
        %s2028 = sor.u32 256, 24
        %2029 = vbcast.lane.b32.xlu0 %v2015, %s2028
        %v2030 = vpop.permute.xlu0 %2029
        %v2031 = vlaneseq
        %v2032 = vshrl.u32 %v2031, 7
        %v2033 = vsub.s32 3, %v2032
        %v2034 = vrot.slane %v413, %v2033
        %2036 = vbcast.lane.b32.xlu0 %v2034, 256
        %v2037 = vpop.permute.xlu0 %2036
        %s2039 = sor.u32 256, 8
        %2040 = vbcast.lane.b32.xlu0 %v2034, %s2039
        %v2041 = vpop.permute.xlu0 %2040
        %s2043 = sor.u32 256, 16
        %2044 = vbcast.lane.b32.xlu0 %v2034, %s2043
        %v2045 = vpop.permute.xlu0 %2044
        %s2047 = sor.u32 256, 24
        %2048 = vbcast.lane.b32.xlu0 %v2034, %s2047
        %v2049 = vpop.permute.xlu0 %2048
        %v2050 = vlaneseq
        %v2051 = vshrl.u32 %v2050, 7
        %v2052 = vsub.s32 3, %v2051
        %v2053 = vrot.slane %v419, %v2052
        %2055 = vbcast.lane.b32.xlu0 %v2053, 256
        %v2056 = vpop.permute.xlu0 %2055
        %s2058 = sor.u32 256, 8
        %2059 = vbcast.lane.b32.xlu0 %v2053, %s2058
        %v2060 = vpop.permute.xlu0 %2059
        %s2062 = sor.u32 256, 16
        %2063 = vbcast.lane.b32.xlu0 %v2053, %s2062
        %v2064 = vpop.permute.xlu0 %2063
        %s2066 = sor.u32 256, 24
        %2067 = vbcast.lane.b32.xlu0 %v2053, %s2066
        %v2068 = vpop.permute.xlu0 %2067
        %v2069 = vadd.f32 %v1999, %v1977
        %v2070 = vadd.f32 %v2003, %v1978
        %v2071 = vadd.f32 %v2007, %v1979
        %v2072 = vadd.f32 %v2011, %v1980
        %v2073 = vadd.f32 %v2018, %v1977
        %v2074 = vadd.f32 %v2022, %v1978
        %v2075 = vadd.f32 %v2026, %v1979
        %v2076 = vadd.f32 %v2030, %v1980
        %v2077 = vadd.f32 %v2037, %v1977
        %v2078 = vadd.f32 %v2041, %v1978
        %v2079 = vadd.f32 %v2045, %v1979
        %v2080 = vadd.f32 %v2049, %v1980
        %v2081 = vadd.f32 %v2056, %v1977
        %v2082 = vadd.f32 %v2060, %v1978
        %v2083 = vadd.f32 %v2064, %v1979
        %v2084 = vadd.f32 %v2068, %v1980
        %v2085 = vtanh.pop %v2069
        %v2086 = vtanh.pop %v2070
        %v2087 = vtanh.pop %v2071
        %v2088 = vtanh.pop %v2072
        %v2089 = vtanh.pop %v2073
        %v2090 = vtanh.pop %v2074
        %v2091 = vtanh.pop %v2075
        %v2092 = vtanh.pop %v2076
        %v2093 = vtanh.pop %v2077
        %v2094 = vtanh.pop %v2078
        %v2095 = vtanh.pop %v2079
        %v2096 = vtanh.pop %v2080
        %v2097 = vtanh.pop %v2081
        %v2098 = vtanh.pop %v2082
        %v2099 = vtanh.pop %v2083
        %v2100 = vtanh.pop %v2084
        %v2101 = vmul.f32 %v2085, %v590
        %v2102 = vmul.f32 %v2086, %v594
        %v2103 = vmul.f32 %v2087, %v598
        %v2104 = vmul.f32 %v2088, %v602
        %v2105 = vmul.f32 %v2089, %v590
        %v2106 = vmul.f32 %v2090, %v594
        %v2107 = vmul.f32 %v2091, %v598
        %v2108 = vmul.f32 %v2092, %v602
        %v2109 = vmul.f32 %v2093, %v590
        %v2110 = vmul.f32 %v2094, %v594
        %v2111 = vmul.f32 %v2095, %v598
        %v2112 = vmul.f32 %v2096, %v602
        %v2113 = vmul.f32 %v2097, %v590
        %v2114 = vmul.f32 %v2098, %v594
        %v2115 = vmul.f32 %v2099, %v598
        %v2116 = vmul.f32 %v2100, %v602
        %v2117 = vsel %vm846, %v2101, 0.0
        %v2118 = vsel %vm846, %v2102, 0.0
        %v2119 = vadd.f32 %v2117, %v2118
        %v2120 = vsel %vm846, %v2103, 0.0
        %v2121 = vadd.f32 %v2119, %v2120
        %v2122 = vsel %vm846, %v2104, 0.0
        %v2123 = vadd.f32 %v2121, %v2122
        %v2124 = vrot.slane %v2123, 4
        %v2125 = vadd.f32 %v2123, %v2124
        %v2126 = vrot.slane %v2125, 2
        %v2127 = vadd.f32 %v2125, %v2126
        %v2128 = vrot.slane %v2127, 1
        %v2129 = vadd.f32 %v2127, %v2128
        %v2130 = vsel %vm846, %v2105, 0.0
        %v2131 = vsel %vm846, %v2106, 0.0
        %v2132 = vadd.f32 %v2130, %v2131
        %v2133 = vsel %vm846, %v2107, 0.0
        %v2134 = vadd.f32 %v2132, %v2133
        %v2135 = vsel %vm846, %v2108, 0.0
        %v2136 = vadd.f32 %v2134, %v2135
        %v2137 = vrot.slane %v2136, 4
        %v2138 = vadd.f32 %v2136, %v2137
        %v2139 = vrot.slane %v2138, 2
        %v2140 = vadd.f32 %v2138, %v2139
        %v2141 = vrot.slane %v2140, 1
        %v2142 = vadd.f32 %v2140, %v2141
        %v2143 = vsel %vm846, %v2109, 0.0
        %v2144 = vsel %vm846, %v2110, 0.0
        %v2145 = vadd.f32 %v2143, %v2144
        %v2146 = vsel %vm846, %v2111, 0.0
        %v2147 = vadd.f32 %v2145, %v2146
        %v2148 = vsel %vm846, %v2112, 0.0
        %v2149 = vadd.f32 %v2147, %v2148
        %v2150 = vrot.slane %v2149, 4
        %v2151 = vadd.f32 %v2149, %v2150
        %v2152 = vrot.slane %v2151, 2
        %v2153 = vadd.f32 %v2151, %v2152
        %v2154 = vrot.slane %v2153, 1
        %v2155 = vadd.f32 %v2153, %v2154
        %v2156 = vsel %vm846, %v2113, 0.0
        %v2157 = vsel %vm846, %v2114, 0.0
        %v2158 = vadd.f32 %v2156, %v2157
        %v2159 = vsel %vm846, %v2115, 0.0
        %v2160 = vadd.f32 %v2158, %v2159
        %v2161 = vsel %vm846, %v2116, 0.0
        %v2162 = vadd.f32 %v2160, %v2161
        %v2163 = vrot.slane %v2162, 4
        %v2164 = vadd.f32 %v2162, %v2163
        %v2165 = vrot.slane %v2164, 2
        %v2166 = vadd.f32 %v2164, %v2165
        %v2167 = vrot.slane %v2166, 1
        %v2168 = vadd.f32 %v2166, %v2167
        %v2169 = vlaneseq
        %v2170 = vshrl.u32 %v2169, 7
        %v2171 = vsub.s32 3, %v2170
        %v2172 = vrot.slane %v900, %v2171
        %vm2173 = vcmp.eq.s32.totalorder %v2172, 1
        %v2178 = vsel %vm667, %v2142, %v2129
        %v2179 = vsel %vm669, %v2155, %v2178
        %v2180 = vsel %vm671, %v2168, %v2179
        %v2182 = vsel %vm2173, %v2180, -1e+30
        %v2183 = vsel %vm915, %v2182, -inf
        %2184 = vmax.xlane.f32.xlu0 %v2183
        %v2185 = vpop.xlane.xlu0 %2184
        %v2186 = vsub.f32 %v2182, %v2185
        %v2187 = vmul.f32 %v2186, 1.442695
        %v2188 = vpow.pop %v2187
        %v2189 = vsel %vm915, %v2188, 0.0
        %2190 = vadd.xlane.f32.xlu0 %v2189
        %v2191 = vpop.xlane.xlu0 %2190
        %v2192 = vrcp.pop %v2191
        %v2193 = vmul.f32 1.0, %v2192
        %v2194 = vmul.f32 %v2188, %v2193
        %v2195 = vrot.slane %v297, 3
        %v2196 = vrot.slane %v298, 2
        %v2197 = vsel %vm667, %v2196, %v2195
        %v2198 = vrot.slane %v299, 1
        %v2199 = vsel %vm669, %v2198, %v2197
        %v2200 = vsel %vm671, %v300, %v2199
        %v2201 = vrot.slane %v301, 7
        %v2202 = vsel %vm673, %v2201, %v2200
        %v2203 = vrot.slane %v302, 6
        %v2204 = vsel %vm675, %v2203, %v2202
        %v2205 = vrot.slane %v303, 5
        %v2206 = vsel %vm677, %v2205, %v2204
        %v2207 = vrot.slane %v304, 4
        %v2208 = vsel %vm679, %v2207, %v2206
        %v2209 = vrot.slane %v305, 3
        %v2210 = vrot.slane %v306, 2
        %v2211 = vsel %vm667, %v2210, %v2209
        %v2212 = vrot.slane %v307, 1
        %v2213 = vsel %vm669, %v2212, %v2211
        %v2214 = vsel %vm671, %v308, %v2213
        %v2215 = vrot.slane %v309, 7
        %v2216 = vsel %vm673, %v2215, %v2214
        %v2217 = vrot.slane %v310, 6
        %v2218 = vsel %vm675, %v2217, %v2216
        %v2219 = vrot.slane %v311, 5
        %v2220 = vsel %vm677, %v2219, %v2218
        %v2221 = vrot.slane %v312, 4
        %v2222 = vsel %vm679, %v2221, %v2220
        %v2226 = vsel %vm846, %v2194, 0
        %2228 = vmatprep.subr.mxu0 0.0
        %2229 = vmatpush1.msra.mxu0 0.0
        %2230 = vmatprep.subr.mxu0 0.0
        %2231 = vmatpush1.msra.mxu0 0.0
        %2232 = vmatprep.subr.mxu0 0.0
        %2233 = vmatpush1.msra.mxu0 0.0
        %2234 = vmatprep.subr.mxu0 0.0
        %2235 = vmatpush1.msra.mxu0 0.0
        %2236 = vmatprep.subr.mxu0 0.0
        %2237 = vmatpush1.msra.mxu0 0.0
        %2238 = vmatprep.subr.mxu0 0.0
        %2239 = vmatpush1.msra.mxu0 0.0
        %2240 = vmatprep.subr.mxu0 0.0
        %2241 = vmatpush1.msra.mxu0 0.0
        %2242 = vmatprep.subr.mxu0 0.0
        %2243 = vmatpush1.msra.mxu0 0.0
        %2244 = vmatprep.subr.mxu0 0.0
        %2245 = vmatpush1.msra.mxu0 0.0
        %2246 = vmatprep.subr.mxu0 0.0
        %2247 = vmatpush1.msra.mxu0 0.0
        %2248 = vmatprep.subr.mxu0 0.0
        %2249 = vmatpush1.msra.mxu0 0.0
        %2250 = vmatprep.subr.mxu0 0.0
        %2251 = vmatpush1.msra.mxu0 0.0
        %2252 = vmatprep.subr.mxu0 0.0
        %2253 = vmatpush1.msra.mxu0 0.0
        %2254 = vmatprep.subr.mxu0 0.0
        %2255 = vmatpush1.msra.mxu0 0.0
        %2256 = vmatprep.subr.mxu0 0.0
        %2257 = vmatpush1.msra.mxu0 %v2222
        %2258 = vmatprep.subr.mxu0 0.0
        %2259 = vmatpush1.msra.mxu0 %v2208
        %2260 = vmatprep.subr.mxu0 0.0
        %2261 = vmatpush2.msra.mxu0 0.0
        %2262 = vmatprep.subr.mxu0 0.0
        %2263 = vmatpush2.msra.mxu0 0.0
        %2264 = vmatprep.subr.mxu0 0.0
        %2265 = vmatpush2.msra.mxu0 0.0
        %2266 = vmatprep.subr.mxu0 0.0
        %2267 = vmatpush2.msra.mxu0 0.0
        %2268 = vmatprep.subr.mxu0 0.0
        %2269 = vmatpush2.msra.mxu0 0.0
        %2270 = vmatprep.subr.mxu0 0.0
        %2271 = vmatpush2.msra.mxu0 0.0
        %2272 = vmatprep.subr.mxu0 0.0
        %2273 = vmatpush2.msra.mxu0 0.0
        %2274 = vmatprep.subr.mxu0 0.0
        %2275 = vmatpush2.msra.mxu0 0.0
        %2276 = vmatprep.subr.mxu0 0.0
        %2277 = vmatpush2.msra.mxu0 0.0
        %2278 = vmatprep.subr.mxu0 0.0
        %2279 = vmatpush2.msra.mxu0 0.0
        %2280 = vmatprep.subr.mxu0 0.0
        %2281 = vmatpush2.msra.mxu0 0.0
        %2282 = vmatprep.subr.mxu0 0.0
        %2283 = vmatpush2.msra.mxu0 0.0
        %2284 = vmatprep.subr.mxu0 0.0
        %2285 = vmatpush2.msra.mxu0 0.0
        %2286 = vmatprep.subr.mxu0 0.0
        %2287 = vmatpush2.msra.mxu0 0.0
        %2288 = vmatprep.subr.mxu0 0.0
        %2289 = vmatpush2.msra.mxu0 0.0
        %2290 = vmatprep.subr.mxu0 0.0
        %2291 = vmatpush2.msra.mxu0 0.0
        %2292 = vmatprep.mubr.f32.mxu0 0.0
        %2293 = vmatmul.mubr.f32.gmra.mxu0 %v2226
        %v2294 = vpop.f32.mrf.mxu0
        %v2295 = vadd.f32 0.0, %v2294
        %v2296 = vpop.f32.mrf.mxu0
        %2297 = vdwg.mxu0
        %v2298 = vrot.slane %v294, 7
        %v2299 = vsel %vm667, %v2298, %v293
        %v2300 = vrot.slane %v295, 6
        %v2301 = vsel %vm669, %v2300, %v2299
        %v2302 = vrot.slane %v296, 5
        %v2303 = vsel %vm671, %v2302, %v2301
        %2304 = vrot.lane.b32.xlu0 %v2303, 32
        %v2305 = vpop.permute.xlu0 %2304
        %2308 = vrot.lane.b32.xlu0 %v1461, 64
        %v2309 = vpop.permute.xlu0 %2308
        %v2311 = vrot.slane %v293, 1
        %v2312 = vsel %vm667, %v294, %v2311
        %v2313 = vrot.slane %v295, 7
        %v2314 = vsel %vm669, %v2313, %v2312
        %v2315 = vrot.slane %v296, 6
        %v2316 = vsel %vm671, %v2315, %v2314
        %2317 = vrot.lane.b32.xlu0 %v2316, 96
        %v2318 = vpop.permute.xlu0 %2317
        %v2320 = vrot.slane %v293, 2
        %v2321 = vrot.slane %v294, 1
        %v2322 = vsel %vm667, %v2321, %v2320
        %v2323 = vsel %vm669, %v295, %v2322
        %v2324 = vrot.slane %v296, 7
        %v2325 = vsel %vm671, %v2324, %v2323
        %2326 = vrot.lane.b32.xlu0 %v2325, 32
        %v2327 = vpop.permute.xlu0 %2326
        %2330 = vrot.lane.b32.xlu0 %v2295, 64
        %v2331 = vpop.permute.xlu0 %2330
        %v2333 = vrot.slane %v293, 3
        %v2334 = vrot.slane %v294, 2
        %v2335 = vsel %vm667, %v2334, %v2333
        %v2336 = vrot.slane %v295, 1
        %v2337 = vsel %vm669, %v2336, %v2335
        %v2338 = vsel %vm671, %v296, %v2337
        %2339 = vrot.lane.b32.xlu0 %v2338, 96
        %v2340 = vpop.permute.xlu0 %2339
        %v2342 = vsel %vm336, %v1044, %v2305
        %vm2343 = vcmask 523264
        %v2344 = vsel %vm2343, %v2342, %v2309
        %vm2345 = vcmask 785408
        %v2346 = vsel %vm2345, %v2344, %v2318
        %v2347 = vsel %vm336, %v1878, %v2327
        %v2348 = vsel %vm2343, %v2347, %v2331
        %v2349 = vsel %vm2345, %v2348, %v2340
        %v2352 = vcombine.low %v2346, %v2349
        %2354 = vst [vmem:[%s275] sm:$0xff] %v2352
        %s2355 = sand.u32 %s161, 1
        %s2356 = scalar_lea.sflag [#allocation4], %s2355
        %s2357 = sand.u32 %s161, 1
        %s2358 = smul.addr %s2357, 8
        %s2359 = scalar_lea.vmem [#allocation7], %s2358
        // Predicated region
        $region53: #{tpu_custom_call.1} parent=43 // pred_check
          %p2360 = pneg %p171
        $region54: #{tpu_custom_call.1} parent=43 // pred_check_branch
          %2362 = sbr.rel (%p2360) target = $region56
        $region55: #{tpu_custom_call.1} parent=43 // pred_region
          %s2364 = ssub.s32 128, 128
          %2365 = vsyncadd %s2356, %s2364
          %s2366 = smul.addr %s22, 2
          %s2367 = smul.addr %s2366, 64
          %s2368 = scalar_lea.hbm %s6, %s2367
          %s2370 = sshll.u32 %s2359, 4
          %s2371 = int_to_ptr.vmem [resolvable:$true] %s2370
          %2373 = dma.vmem_to_hbm [thread:$0]  %s2371, 128, %s2368, %s2356
        $region56: #{tpu_custom_call.1} parent=43 // pred_fallthru
          _
      $region44: #{tpu_custom_call.1} parent=5 // pred_fallthru
        _
      %p2374 = scmp.le.s32.totalorder 2, %s17
      // Predicated region
      $region57: #{tpu_custom_call.1} parent=5 // pred_check
        %p2375 = pneg %p2374
      $region58: #{tpu_custom_call.1} parent=5 // pred_check_branch
        %2377 = sbr.rel (%p2375) target = $region60
      $region59: #{tpu_custom_call.1} parent=5 // pred_region
        %s2378 = ssub.s32 %s17, 2
        // Predicated region
        $region61: #{tpu_custom_call.1} parent=59 // pred_check
          %p2379 = pneg %p177
        $region62: #{tpu_custom_call.1} parent=59 // pred_check_branch
          %2381 = sbr.rel (%p2379) target = $region64
        $region63: #{tpu_custom_call.1} parent=59 // pred_region
          %s2382 = sand.u32 %s162, 1
          %s2383 = scalar_lea.sflag [#allocation4], %s2382
          %s2384 = sand.u32 %s162, 1
          %s2385 = smul.addr %s2384, 8
          %s2386 = scalar_lea.vmem [#allocation7], %s2385
          %2387 = dma.done %s2383, 128
        $region64: #{tpu_custom_call.1} parent=59 // pred_fallthru
          _
      $region60: #{tpu_custom_call.1} parent=5 // pred_fallthru
        _
    $region6: #{tpu_custom_call.1} parent=1 // loop_footer
      %s21 = sadd.s32 1, %s17
    $region7: #{tpu_custom_call.1} parent=1 // loop_footer_branch
      %16 = sbr.rel target = $region3
    $region8: #{tpu_custom_call.1} parent=1 // loop_exit
      _
    %2388 = vsyncpa [#allocation3], 1
    %s2389 = scalar_lea.sflag [#allocation3], 1
    %2390 = vsyncpa %s2389, 1
    %2391 = vsyncpa [#allocation6], 1
    %2392 = vsyncpa [#allocation4], 1
    %s2393 = scalar_lea.sflag [#allocation4], 1
    %2394 = vsyncpa %s2393, 1

</llo_original>
